<compile_context>
chip_gen: v7x
topology: tpu7x:2x2x1
jax: 0.10.0
libtpu: 0.0.40
codegen_flags: <defaults>
</compile_context>

<pallas_src>
import jax
import jax.numpy as jnp
from jax.experimental import pallas as pl
from jax.experimental.pallas import tpu as pltpu


# Logical (PyTorch) dims.
LATENT_DIM = 200
HIDDEN_DIM = 400
OUTPUT_DIM = 784   # e.g. 28*28 MNIST reconstruction

# Lane-padded dims (multiples of 128 -> full MXU tiles, lane-dense stores).
LATENT_PAD = 256
HIDDEN_PAD = 512
OUTPUT_PAD = 896


def _round_up(n, m):
    return ((n + m - 1) // m) * m


def _leaky_relu(x, alpha=0.2):
    return jnp.where(x > 0, x, alpha * x)


# ----------------------------------------------------------------------------
# Kernel: one batch tile through all three layers, everything VMEM-resident.
# ----------------------------------------------------------------------------
def decoder_kernel(x_ref, w1_ref, b1_ref, w2_ref, b2_ref, w3_ref, b3_ref, out_ref):
    x = x_ref[...]                                                  # bf16 [bt, 256]

    # FC_hidden + LeakyReLU (f32 accumulate, bf16 re-cast for the next MXU pass)
    h = jnp.dot(x, w1_ref[...], preferred_element_type=jnp.float32) + b1_ref[...]
    h = _leaky_relu(h).astype(jnp.bfloat16)

    # FC_hidden2 + LeakyReLU
    h = jnp.dot(h, w2_ref[...], preferred_element_type=jnp.float32) + b2_ref[...]
    h = _leaky_relu(h).astype(jnp.bfloat16)

    # FC_output + sigmoid.  sigmoid(z) = 1 / (1 + exp(-z)): exp and the
    # approximate reciprocal both issue on the EUP slot, keeping VALU slots
    # free for the bias adds / re-casts in the matmul epilogues.
    z = jnp.dot(h, w3_ref[...], preferred_element_type=jnp.float32) + b3_ref[...]
    e = jnp.exp(-z)
    out_ref[...] = pl.reciprocal(1.0 + e, approx=True).astype(out_ref.dtype)


# ----------------------------------------------------------------------------
# Wrapper
# ----------------------------------------------------------------------------
def decoder_forward(x, padded_params, *, batch_tile=512, unpad=True):
    """x: [B, LATENT_DIM] f32/bf16.  padded_params: output of prepare_params.

    batch_tile=512 amortizes the ~0.35us per-grid-step overhead on v6e while
    staying well inside the 32 MiB scoped-VMEM default on v7x (64 MiB phys).
    With unpad=False the padded (Bp, OUTPUT_PAD) bf16 slab is returned
    directly (rows >= B and columns >= OUTPUT_DIM are padding).
    """
    w1, b1, w2, b2, w3, b3 = padded_params
    B = x.shape[0]

    # Batch tiling.
    if B <= batch_tile:
        bt = _round_up(max(B, 1), 16)          # 16: bf16 sublane packing
        # v7x has 2 TensorCores: split mid/large single-tile batches into >=2
        # grid steps so the "parallel" batch axis can shard across both cores.
        if bt >= 128:
            bt = _round_up((bt + 1) // 2, 16)
    else:
        bt = batch_tile
    Bp = _round_up(B, bt)
    num_tiles = Bp // bt

    # Pad batch + latent dims with zeros, cast activations to bf16.
    xp = jnp.zeros((Bp, LATENT_PAD), jnp.bfloat16)
    xp = xp.at[:B, :LATENT_DIM].set(x.astype(jnp.bfloat16))

    # x / out walk the batch grid; weights & biases keep block (0, 0) so they
    # stay VMEM-resident across grid steps (no re-DMA).
    grid_spec = pltpu.PrefetchScalarGridSpec(
        num_scalar_prefetch=0,
        grid=(num_tiles,),
        in_specs=[
            pl.BlockSpec((bt, LATENT_PAD), lambda i: (i, 0)),
            pl.BlockSpec((LATENT_PAD, HIDDEN_PAD), lambda i: (0, 0)),
            pl.BlockSpec((1, HIDDEN_PAD), lambda i: (0, 0)),
            pl.BlockSpec((HIDDEN_PAD, HIDDEN_PAD), lambda i: (0, 0)),
            pl.BlockSpec((1, HIDDEN_PAD), lambda i: (0, 0)),
            pl.BlockSpec((HIDDEN_PAD, OUTPUT_PAD), lambda i: (0, 0)),
            pl.BlockSpec((1, OUTPUT_PAD), lambda i: (0, 0)),
        ],
        out_specs=pl.BlockSpec((bt, OUTPUT_PAD), lambda i: (i, 0)),
    )

    flops = 2 * Bp * (LATENT_PAD * HIDDEN_PAD
                      + HIDDEN_PAD * HIDDEN_PAD
                      + HIDDEN_PAD * OUTPUT_PAD)
    bytes_accessed = (
        Bp * LATENT_PAD * 2                                   # x (bf16)
        + (LATENT_PAD * HIDDEN_PAD + HIDDEN_PAD * HIDDEN_PAD
           + HIDDEN_PAD * OUTPUT_PAD) * 2                     # weights (bf16)
        + (2 * HIDDEN_PAD + OUTPUT_PAD) * 4                   # biases (f32)
        + Bp * OUTPUT_PAD * 2                                 # output (bf16)
    )
    cost = pl.CostEstimate(flops=flops,
                           transcendentals=2 * Bp * OUTPUT_PAD,   # exp + recip
                           bytes_accessed=bytes_accessed)

    out = pl.pallas_call(
        decoder_kernel,
        out_shape=jax.ShapeDtypeStruct((Bp, OUTPUT_PAD), jnp.bfloat16),
        grid_spec=grid_spec,
        compiler_params=pltpu.CompilerParams(
            dimension_semantics=("parallel",),        # v7x: shard batch over TCs
            vmem_limit_bytes=48 * 1024 * 1024),
        cost_estimate=cost,
    )(xp, w1, b1, w2, b2, w3, b3)

    if not unpad:
        return out                      # padded (Bp, OUTPUT_PAD) bf16 slab
    # Drop batch / feature padding.
    return out[:B, :OUTPUT_DIM]


# ----------------------------------------------------------------------------
# Parameter init (matches nn.Linear's uniform(-1/sqrt(fan_in), 1/sqrt(fan_in)))
# and padding/casting for the kernel.
# ----------------------------------------------------------------------------
def init_params(key):
    ks = jax.random.split(key, 6)

    def linear(kw, kb, fan_in, fan_out):
        bound = 1.0 / jnp.sqrt(fan_in)
        # stored as [in, out] so the kernel computes x @ W
        w = jax.random.uniform(kw, (fan_in, fan_out), jnp.float32, -bound, bound)
        b = jax.random.uniform(kb, (1, fan_out), jnp.float32, -bound, bound)
        return w, b

    w1, b1 = linear(ks[0], ks[1], LATENT_DIM, HIDDEN_DIM)
    w2, b2 = linear(ks[2], ks[3], HIDDEN_DIM, HIDDEN_DIM)
    w3, b3 = linear(ks[4], ks[5], HIDDEN_DIM, OUTPUT_DIM)
    return (w1, b1, w2, b2, w3, b3)


def prepare_params(raw_params):
    """Zero-pad to lane-aligned shapes; weights -> bf16, biases stay f32."""
    # TODO(synk): v5e-specific build could use int8 weights (v5e MXU int path)
    # and v7x could use fp8 to halve the weight stream; needs an accuracy check.
    w1, b1, w2, b2, w3, b3 = raw_params

    def pad_w(w, rows, cols):
        out = jnp.zeros((rows, cols), jnp.float32)
        out = out.at[:w.shape[0], :w.shape[1]].set(w)
        return out.astype(jnp.bfloat16)

    def pad_b(b, cols):
        out = jnp.zeros((1, cols), jnp.float32)
        return out.at[:, :b.shape[1]].set(b)

    return (pad_w(w1, LATENT_PAD, HIDDEN_PAD), pad_b(b1, HIDDEN_PAD),
            pad_w(w2, HIDDEN_PAD, HIDDEN_PAD), pad_b(b2, HIDDEN_PAD),
            pad_w(w3, HIDDEN_PAD, OUTPUT_PAD), pad_b(b3, OUTPUT_PAD))


# ----------------------------------------------------------------------------
# Pure-JAX reference (f32 math on the same bf16-quantized weights).
# ----------------------------------------------------------------------------
def decoder_reference(x, padded_params):
    w1, b1, w2, b2, w3, b3 = [p.astype(jnp.float32) for p in padded_params]
    B = x.shape[0]
    xp = jnp.zeros((B, LATENT_PAD), jnp.float32)
    # mimic the kernel's bf16 rounding of the input
    xp = xp.at[:, :LATENT_DIM].set(x.astype(jnp.bfloat16).astype(jnp.float32))
    h = _leaky_relu(xp @ w1 + b1)
    h = _leaky_relu(h @ w2 + b2)
    y = jax.nn.sigmoid(h @ w3 + b3)
    return y[:, :OUTPUT_DIM]


if __name__ == "__main__":
    key = jax.random.PRNGKey(0)
    k_params, k_x = jax.random.split(key)

    B = 16
    raw_params = init_params(k_params)
    params = prepare_params(raw_params)
    x = jax.random.normal(k_x, (B, LATENT_DIM), jnp.float32)

    # jit the whole wrapper so the pad + kernel + unpad slice fuse into one
    # XLA program (no extra HBM round trips around the custom call).
    fwd = jax.jit(decoder_forward)
    out = jax.block_until_ready(fwd(x, params))

    ref = decoder_reference(x, params)
    assert out.shape == (B, OUTPUT_DIM)
    # bf16 intermediates + bf16 output + approx reciprocal -> loosened tolerance.
    err = float(jnp.max(jnp.abs(out.astype(jnp.float32) - ref)))
    assert err < 2e-2, f"mismatch vs JAX reference, max abs err = {err}"

    print("KERNEL_OK")
</pallas_src>

<mosaic_0001>
module attributes {stable_mosaic.version = 11 : i64} {
  func.func @decoder_kernel(%arg0: i32, %arg1: memref<16x256xbf16, #tpu.memory_space<vmem>>, %arg2: memref<256x512xbf16, #tpu.memory_space<vmem>>, %arg3: memref<1x512xf32, #tpu.memory_space<vmem>>, %arg4: memref<512x512xbf16, #tpu.memory_space<vmem>>, %arg5: memref<1x512xf32, #tpu.memory_space<vmem>>, %arg6: memref<512x896xbf16, #tpu.memory_space<vmem>>, %arg7: memref<1x896xf32, #tpu.memory_space<vmem>>, %arg8: memref<16x896xbf16, #tpu.memory_space<vmem>>) attributes {dimension_semantics = [#tpu.dimension_semantics<parallel>], iteration_bounds = array<i64: 1>, scalar_prefetch = 0 : i64, scratch_operands = 0 : i64, tpu.core_type = #tpu.core_type<tc>, window_params = [{transform_indices = @transform_0, window_bounds = array<i64: 16, 256>}, {pipeline_mode = #tpu.pipeline_mode<synchronous>, transform_indices = @transform_1, window_bounds = array<i64: 256, 512>}, {pipeline_mode = #tpu.pipeline_mode<synchronous>, transform_indices = @transform_2, window_bounds = array<i64: 1, 512>}, {pipeline_mode = #tpu.pipeline_mode<synchronous>, transform_indices = @transform_3, window_bounds = array<i64: 512, 512>}, {pipeline_mode = #tpu.pipeline_mode<synchronous>, transform_indices = @transform_4, window_bounds = array<i64: 1, 512>}, {pipeline_mode = #tpu.pipeline_mode<synchronous>, transform_indices = @transform_5, window_bounds = array<i64: 512, 896>}, {pipeline_mode = #tpu.pipeline_mode<synchronous>, transform_indices = @transform_6, window_bounds = array<i64: 1, 896>}, {transform_indices = @transform_7, window_bounds = array<i64: 16, 896>}]} {
    %c0 = arith.constant 0 : index
    %c0_0 = arith.constant 0 : index
    %0 = vector.load %arg1[%c0, %c0_0] : memref<16x256xbf16, #tpu.memory_space<vmem>>, vector<16x256xbf16>
    %c0_1 = arith.constant 0 : index
    %c0_2 = arith.constant 0 : index
    %1 = vector.load %arg2[%c0_1, %c0_2] : memref<256x512xbf16, #tpu.memory_space<vmem>>, vector<256x512xbf16>
    %cst = arith.constant dense<0.000000e+00> : vector<16x512xf32>
    %2 = tpu.matmul %0, %1, %cst {dimension_numbers = #tpu.dot_dimension_numbers<[1], [0], [0], [1], [0, 0, 1, 1], [], []>} : vector<16x256xbf16>, vector<256x512xbf16>, vector<16x512xf32> -> vector<16x512xf32>
    %c0_3 = arith.constant 0 : index
    %c0_4 = arith.constant 0 : index
    %3 = vector.load %arg3[%c0_3, %c0_4] : memref<1x512xf32, #tpu.memory_space<vmem>>, vector<1x512xf32>
    %4 = vector.broadcast %3 : vector<1x512xf32> to vector<16x512xf32>
    %5 = arith.addf %2, %4 : vector<16x512xf32>
    %cst_5 = arith.constant 0.000000e+00 : f32
    %6 = vector.broadcast %cst_5 : f32 to vector<16x512xf32>
    %7 = arith.cmpf ogt, %5, %6 : vector<16x512xf32>
    %cst_6 = arith.constant 2.000000e-01 : f32
    %8 = vector.broadcast %cst_6 : f32 to vector<16x512xf32>
    %9 = arith.mulf %8, %5 : vector<16x512xf32>
    %10 = arith.select %7, %5, %9 : vector<16x512xi1>, vector<16x512xf32>
    %11 = arith.truncf %10 : vector<16x512xf32> to vector<16x512xbf16>
    %c0_7 = arith.constant 0 : index
    %c0_8 = arith.constant 0 : index
    %12 = vector.load %arg4[%c0_7, %c0_8] : memref<512x512xbf16, #tpu.memory_space<vmem>>, vector<512x512xbf16>
    %cst_9 = arith.constant dense<0.000000e+00> : vector<16x512xf32>
    %13 = tpu.matmul %11, %12, %cst_9 {dimension_numbers = #tpu.dot_dimension_numbers<[1], [0], [0], [1], [0, 0, 1, 1], [], []>} : vector<16x512xbf16>, vector<512x512xbf16>, vector<16x512xf32> -> vector<16x512xf32>
    %c0_10 = arith.constant 0 : index
    %c0_11 = arith.constant 0 : index
    %14 = vector.load %arg5[%c0_10, %c0_11] : memref<1x512xf32, #tpu.memory_space<vmem>>, vector<1x512xf32>
    %15 = vector.broadcast %14 : vector<1x512xf32> to vector<16x512xf32>
    %16 = arith.addf %13, %15 : vector<16x512xf32>
    %cst_12 = arith.constant 0.000000e+00 : f32
    %17 = vector.broadcast %cst_12 : f32 to vector<16x512xf32>
    %18 = arith.cmpf ogt, %16, %17 : vector<16x512xf32>
    %cst_13 = arith.constant 2.000000e-01 : f32
    %19 = vector.broadcast %cst_13 : f32 to vector<16x512xf32>
    %20 = arith.mulf %19, %16 : vector<16x512xf32>
    %21 = arith.select %18, %16, %20 : vector<16x512xi1>, vector<16x512xf32>
    %22 = arith.truncf %21 : vector<16x512xf32> to vector<16x512xbf16>
    %c0_14 = arith.constant 0 : index
    %c0_15 = arith.constant 0 : index
    %23 = vector.load %arg6[%c0_14, %c0_15] : memref<512x896xbf16, #tpu.memory_space<vmem>>, vector<512x896xbf16>
    %cst_16 = arith.constant dense<0.000000e+00> : vector<16x896xf32>
    %24 = tpu.matmul %22, %23, %cst_16 {dimension_numbers = #tpu.dot_dimension_numbers<[1], [0], [0], [1], [0, 0, 1, 1], [], []>} : vector<16x512xbf16>, vector<512x896xbf16>, vector<16x896xf32> -> vector<16x896xf32>
    %c0_17 = arith.constant 0 : index
    %c0_18 = arith.constant 0 : index
    %25 = vector.load %arg7[%c0_17, %c0_18] : memref<1x896xf32, #tpu.memory_space<vmem>>, vector<1x896xf32>
    %26 = vector.broadcast %25 : vector<1x896xf32> to vector<16x896xf32>
    %27 = arith.addf %24, %26 : vector<16x896xf32>
    %cst_19 = arith.constant 0.000000e+00 : f32
    %28 = vector.broadcast %cst_19 : f32 to vector<16x896xf32>
    %29 = arith.subf %28, %27 : vector<16x896xf32>
    %30 = math.exp %29 : vector<16x896xf32>
    %cst_20 = arith.constant 1.000000e+00 : f32
    %31 = vector.broadcast %cst_20 : f32 to vector<16x896xf32>
    %32 = arith.addf %31, %30 : vector<16x896xf32>
    %33 = tpu.reciprocal %32 {approx = true} : vector<16x896xf32> -> vector<16x896xf32>
    %34 = arith.truncf %33 : vector<16x896xf32> to vector<16x896xbf16>
    %c0_21 = arith.constant 0 : index
    %c0_22 = arith.constant 0 : index
    %35 = vector.load %arg8[%c0_21, %c0_22] : memref<16x896xbf16, #tpu.memory_space<vmem>>, vector<16x896xbf16>
    tpu.vector_store %arg8[%c0_21, %c0_22], %34 {strides = array<i32>} : memref<16x896xbf16, #tpu.memory_space<vmem>>, vector<16x896xbf16>,
    return
  }
  func.func @transform_0(%arg0: i32) -> (i32, i32) {
    %c0_i32 = arith.constant 0 : i32
    %c0_i32_0 = arith.constant 0 : i32
    return %arg0, %c0_i32 : i32, i32
  }
  func.func @transform_1(%arg0: i32) -> (i32, i32) {
    %c0_i32 = arith.constant 0 : i32
    %c0_i32_0 = arith.constant 0 : i32
    %c0_i32_1 = arith.constant 0 : i32
    return %c0_i32, %c0_i32_0 : i32, i32
  }
  func.func @transform_2(%arg0: i32) -> (i32, i32) {
    %c0_i32 = arith.constant 0 : i32
    %c0_i32_0 = arith.constant 0 : i32
    %c0_i32_1 = arith.constant 0 : i32
    return %c0_i32, %c0_i32_0 : i32, i32
  }
  func.func @transform_3(%arg0: i32) -> (i32, i32) {
    %c0_i32 = arith.constant 0 : i32
    %c0_i32_0 = arith.constant 0 : i32
    %c0_i32_1 = arith.constant 0 : i32
    return %c0_i32, %c0_i32_0 : i32, i32
  }
  func.func @transform_4(%arg0: i32) -> (i32, i32) {
    %c0_i32 = arith.constant 0 : i32
    %c0_i32_0 = arith.constant 0 : i32
    %c0_i32_1 = arith.constant 0 : i32
    return %c0_i32, %c0_i32_0 : i32, i32
  }
  func.func @transform_5(%arg0: i32) -> (i32, i32) {
    %c0_i32 = arith.constant 0 : i32
    %c0_i32_0 = arith.constant 0 : i32
    %c0_i32_1 = arith.constant 0 : i32
    return %c0_i32, %c0_i32_0 : i32, i32
  }
  func.func @transform_6(%arg0: i32) -> (i32, i32) {
    %c0_i32 = arith.constant 0 : i32
    %c0_i32_0 = arith.constant 0 : i32
    %c0_i32_1 = arith.constant 0 : i32
    return %c0_i32, %c0_i32_0 : i32, i32
  }
  func.func @transform_7(%arg0: i32) -> (i32, i32) {
    %c0_i32 = arith.constant 0 : i32
    %c0_i32_0 = arith.constant 0 : i32
    return %arg0, %c0_i32 : i32, i32
  }
}

</mosaic_0001>

<llo_original>
// kernel: decoder_forward.1
$region0: #{decoder_forward.1}
  #allocation0 [shape = 'u32[]', space=smem, size = 0x4, offset = 0x4, fixed_abs, tag = 'smem constant byte address 0x4 - core index']
  #allocation1 [shape = 'u32[144,128]{1,0:T(1,128)}', space=vmem, size = 0x12000, scoped, tag = 'internal scratch']
  %s0 = inlined_call_operand.vmem [shape: bf16[16,256], index: 0, kind: input, shape index: {}]
  %s1 = inlined_call_operand.hbm [shape: bf16[256,512], index: 1, kind: input, shape index: {}]
  %s2 = inlined_call_operand.vmem [shape: f32[1,512], index: 2, kind: input, shape index: {}]
  %s3 = inlined_call_operand.hbm [shape: bf16[512,512], index: 3, kind: input, shape index: {}]
  %s4 = inlined_call_operand.vmem [shape: f32[1,512], index: 4, kind: input, shape index: {}]
  %s5 = inlined_call_operand.hbm [shape: bf16[512,896], index: 5, kind: input, shape index: {}]
  %s6 = inlined_call_operand.vmem [shape: f32[1,896], index: 6, kind: input, shape index: {}]
  %s7 = inlined_call_operand.hbm [shape: bf16[16,896], index: 7, kind: output, shape index: {}]
  %s8 = sld [smem:[#allocation0]]
  $region50: #{decoder_forward.1} parent=0
    _
  %s10 = ssub.s32 1, %s8
  %s11 = scalar_select 0, %s10, %s8
  $region1: #{decoder_forward.1} parent=0
    #allocation2 [shape = 'u8[262144]{0}', space=vmem, size = 0x40000, scoped, tag = 'input window, operand 1, single buffered']
    #allocation3 [shape = 's32[1]{0}', space=sflag, size = 0x4, scoped, tag = 'scoped memory for decoder_forward.1']
    #allocation4 [shape = 's32[1]{0}', space=sflag, size = 0x4, scoped, tag = 'scoped memory for decoder_forward.1']
    #allocation5 [shape = 'u8[524288]{0}', space=vmem, size = 0x80000, scoped, tag = 'input window, operand 3, single buffered']
    #allocation6 [shape = 's32[1]{0}', space=sflag, size = 0x4, scoped, tag = 'scoped memory for decoder_forward.1']
    #allocation7 [shape = 'u8[917504]{0}', space=vmem, size = 0xe0000, scoped, tag = 'input window, operand 5, single buffered']
    #allocation8 [shape = 'u8[28672]{0}', space=vmem, size = 0x7000, scoped, tag = 'output window, operand 0, single buffered']
    %12 = vsyncpa [#allocation3], 0
    %13 = vsyncpa [#allocation6], 0
    %14 = vsyncpa [#allocation4], 0
    // Predicated region
    $region2: #{decoder_forward.1} parent=1 // pred_check
      _
    $region3: #{decoder_forward.1} parent=1 // pred_check_branch
      %16 = sbr.rel (0) target = $region5
    $region4: #{decoder_forward.1} parent=1 // pred_region
      _
    $region5: #{decoder_forward.1} parent=1 // pred_fallthru
      _
    // Predicated region
    $region6: #{decoder_forward.1} parent=1 // pred_check
      _
    $region7: #{decoder_forward.1} parent=1 // pred_check_branch
      %18 = sbr.rel (0) target = $region9
    $region8: #{decoder_forward.1} parent=1 // pred_region
      %s20 = ssub.s32 8192, 8192
      %21 = vsyncadd [#allocation3], %s20
      %s22 = sshll.u32 [#allocation2], 4
      %s23 = int_to_ptr.vmem [resolvable:$true] %s22
      %28 = dma.hbm_to_vmem [thread:$0]  %s1, 8192, %s23, [#allocation3], 256, 256, 16
    $region9: #{decoder_forward.1} parent=1 // pred_fallthru
      _
    // Predicated region
    $region10: #{decoder_forward.1} parent=1 // pred_check
      _
    $region11: #{decoder_forward.1} parent=1 // pred_check_branch
      %30 = sbr.rel (0) target = $region13
    $region12: #{decoder_forward.1} parent=1 // pred_region
      _
    $region13: #{decoder_forward.1} parent=1 // pred_fallthru
      _
    // Predicated region
    $region14: #{decoder_forward.1} parent=1 // pred_check
      _
    $region15: #{decoder_forward.1} parent=1 // pred_check_branch
      %32 = sbr.rel (0) target = $region17
    $region16: #{decoder_forward.1} parent=1 // pred_region
      %s34 = ssub.s32 16384, 16384
      %35 = vsyncadd [#allocation6], %s34
      %s36 = sshll.u32 [#allocation5], 4
      %s37 = int_to_ptr.vmem [resolvable:$true] %s36
      %42 = dma.hbm_to_vmem [thread:$0]  %s3, 16384, %s37, [#allocation6], 256, 256, 16
    $region17: #{decoder_forward.1} parent=1 // pred_fallthru
      _
    // Predicated region
    $region18: #{decoder_forward.1} parent=1 // pred_check
      _
    $region19: #{decoder_forward.1} parent=1 // pred_check_branch
      %44 = sbr.rel (0) target = $region21
    $region20: #{decoder_forward.1} parent=1 // pred_region
      _
    $region21: #{decoder_forward.1} parent=1 // pred_fallthru
      _
    // Predicated region
    $region22: #{decoder_forward.1} parent=1 // pred_check
      _
    $region23: #{decoder_forward.1} parent=1 // pred_check_branch
      %46 = sbr.rel (0) target = $region25
    $region24: #{decoder_forward.1} parent=1 // pred_region
      %s48 = ssub.s32 28672, 28672
      %49 = vsyncadd [#allocation6], %s48
      %s50 = sshll.u32 [#allocation7], 4
      %s51 = int_to_ptr.vmem [resolvable:$true] %s50
      %56 = dma.hbm_to_vmem [thread:$0]  %s5, 28672, %s51, [#allocation6], 448, 448, 28
    $region25: #{decoder_forward.1} parent=1 // pred_fallthru
      _
    // Predicated region
    $region26: #{decoder_forward.1} parent=1 // pred_check
      _
    $region27: #{decoder_forward.1} parent=1 // pred_check_branch
      %58 = sbr.rel (0) target = $region29
    $region28: #{decoder_forward.1} parent=1 // pred_region
      _
    $region29: #{decoder_forward.1} parent=1 // pred_fallthru
      _
    // Predicated region
    $region30: #{decoder_forward.1} parent=1 // pred_check
      _
    $region31: #{decoder_forward.1} parent=1 // pred_check_branch
      %60 = sbr.rel (0) target = $region33
    $region32: #{decoder_forward.1} parent=1 // pred_region
      %61 = dma.done [#allocation3], 8192
    $region33: #{decoder_forward.1} parent=1 // pred_fallthru
      _
    // Predicated region
    $region34: #{decoder_forward.1} parent=1 // pred_check
      _
    $region35: #{decoder_forward.1} parent=1 // pred_check_branch
      %63 = sbr.rel (0) target = $region37
    $region36: #{decoder_forward.1} parent=1 // pred_region
      %64 = dma.done [#allocation6], 16384
    $region37: #{decoder_forward.1} parent=1 // pred_fallthru
      _
    // Predicated region
    $region38: #{decoder_forward.1} parent=1 // pred_check
      _
    $region39: #{decoder_forward.1} parent=1 // pred_check_branch
      %66 = sbr.rel (0) target = $region41
    $region40: #{decoder_forward.1} parent=1 // pred_region
      %67 = dma.done [#allocation6], 28672
    $region41: #{decoder_forward.1} parent=1 // pred_fallthru
      _
    %v69 = vld [vmem:[%s0] sm:$0xff]
    %v70 = vld [vmem:[%s0 + $0x8] sm:$0xff]
    %v71 = vld [vmem:[#allocation2] sm:$0xff]
    %v72 = vld [vmem:[#allocation2 + $0x8] sm:$0xff]
    %v73 = vld [vmem:[#allocation2 + $0x10] sm:$0xff]
    %v74 = vld [vmem:[#allocation2 + $0x18] sm:$0xff]
    %v75 = vld [vmem:[#allocation2 + $0x20] sm:$0xff]
    %v76 = vld [vmem:[#allocation2 + $0x28] sm:$0xff]
    %v77 = vld [vmem:[#allocation2 + $0x30] sm:$0xff]
    %v78 = vld [vmem:[#allocation2 + $0x38] sm:$0xff]
    %v79 = vld [vmem:[#allocation2 + $0x40] sm:$0xff]
    %v80 = vld [vmem:[#allocation2 + $0x48] sm:$0xff]
    %v81 = vld [vmem:[#allocation2 + $0x50] sm:$0xff]
    %v82 = vld [vmem:[#allocation2 + $0x58] sm:$0xff]
    %v83 = vld [vmem:[#allocation2 + $0x60] sm:$0xff]
    %v84 = vld [vmem:[#allocation2 + $0x68] sm:$0xff]
    %v85 = vld [vmem:[#allocation2 + $0x70] sm:$0xff]
    %v86 = vld [vmem:[#allocation2 + $0x78] sm:$0xff]
    %v87 = vld [vmem:[#allocation2 + $0x80] sm:$0xff]
    %v88 = vld [vmem:[#allocation2 + $0x88] sm:$0xff]
    %v89 = vld [vmem:[#allocation2 + $0x90] sm:$0xff]
    %v90 = vld [vmem:[#allocation2 + $0x98] sm:$0xff]
    %v91 = vld [vmem:[#allocation2 + $0xa0] sm:$0xff]
    %v92 = vld [vmem:[#allocation2 + $0xa8] sm:$0xff]
    %v93 = vld [vmem:[#allocation2 + $0xb0] sm:$0xff]
    %v94 = vld [vmem:[#allocation2 + $0xb8] sm:$0xff]
    %v95 = vld [vmem:[#allocation2 + $0xc0] sm:$0xff]
    %v96 = vld [vmem:[#allocation2 + $0xc8] sm:$0xff]
    %v97 = vld [vmem:[#allocation2 + $0xd0] sm:$0xff]
    %v98 = vld [vmem:[#allocation2 + $0xd8] sm:$0xff]
    %v99 = vld [vmem:[#allocation2 + $0xe0] sm:$0xff]
    %v100 = vld [vmem:[#allocation2 + $0xe8] sm:$0xff]
    %v101 = vld [vmem:[#allocation2 + $0xf0] sm:$0xff]
    %v102 = vld [vmem:[#allocation2 + $0xf8] sm:$0xff]
    %v103 = vld [vmem:[#allocation2 + $0x100] sm:$0xff]
    %v104 = vld [vmem:[#allocation2 + $0x108] sm:$0xff]
    %v105 = vld [vmem:[#allocation2 + $0x110] sm:$0xff]
    %v106 = vld [vmem:[#allocation2 + $0x118] sm:$0xff]
    %v107 = vld [vmem:[#allocation2 + $0x120] sm:$0xff]
    %v108 = vld [vmem:[#allocation2 + $0x128] sm:$0xff]
    %v109 = vld [vmem:[#allocation2 + $0x130] sm:$0xff]
    %v110 = vld [vmem:[#allocation2 + $0x138] sm:$0xff]
    %v111 = vld [vmem:[#allocation2 + $0x140] sm:$0xff]
    %v112 = vld [vmem:[#allocation2 + $0x148] sm:$0xff]
    %v113 = vld [vmem:[#allocation2 + $0x150] sm:$0xff]
    %v114 = vld [vmem:[#allocation2 + $0x158] sm:$0xff]
    %v115 = vld [vmem:[#allocation2 + $0x160] sm:$0xff]
    %v116 = vld [vmem:[#allocation2 + $0x168] sm:$0xff]
    %v117 = vld [vmem:[#allocation2 + $0x170] sm:$0xff]
    %v118 = vld [vmem:[#allocation2 + $0x178] sm:$0xff]
    %v119 = vld [vmem:[#allocation2 + $0x180] sm:$0xff]
    %v120 = vld [vmem:[#allocation2 + $0x188] sm:$0xff]
    %v121 = vld [vmem:[#allocation2 + $0x190] sm:$0xff]
    %v122 = vld [vmem:[#allocation2 + $0x198] sm:$0xff]
    %v123 = vld [vmem:[#allocation2 + $0x1a0] sm:$0xff]
    %v124 = vld [vmem:[#allocation2 + $0x1a8] sm:$0xff]
    %v125 = vld [vmem:[#allocation2 + $0x1b0] sm:$0xff]
    %v126 = vld [vmem:[#allocation2 + $0x1b8] sm:$0xff]
    %v127 = vld [vmem:[#allocation2 + $0x1c0] sm:$0xff]
    %v128 = vld [vmem:[#allocation2 + $0x1c8] sm:$0xff]
    %v129 = vld [vmem:[#allocation2 + $0x1d0] sm:$0xff]
    %v130 = vld [vmem:[#allocation2 + $0x1d8] sm:$0xff]
    %v131 = vld [vmem:[#allocation2 + $0x1e0] sm:$0xff]
    %v132 = vld [vmem:[#allocation2 + $0x1e8] sm:$0xff]
    %v133 = vld [vmem:[#allocation2 + $0x1f0] sm:$0xff]
    %v134 = vld [vmem:[#allocation2 + $0x1f8] sm:$0xff]
    %v135 = vld [vmem:[%s2] sm:$0xf]
    %v137 = vlaneseq
    %v138 = vshrl.u32 %v137, 7
    %v139 = vsub.s32 0, %v138
    %v140 = vrot.slane %v135, %v139
    %v141 = vlaneseq
    %v142 = vshrl.u32 %v141, 7
    %v143 = vsub.s32 1, %v142
    %v144 = vrot.slane %v135, %v143
    %v145 = vlaneseq
    %v146 = vshrl.u32 %v145, 7
    %v147 = vsub.s32 2, %v146
    %v148 = vrot.slane %v135, %v147
    %v149 = vlaneseq
    %v150 = vshrl.u32 %v149, 7
    %v151 = vsub.s32 3, %v150
    %v152 = vrot.slane %v135, %v151
    %v159 = vunpack.c.l.b16 %v69
    %v160 = vunpack.c.h.b16 %v69
    %v161 = vunpack.c.l.b16 %v70
    %v162 = vunpack.c.h.b16 %v70
    %v163 = vpack.c.b16 %v161, %v159
    %v164 = vpack.c.b16 %v162, %v160
    %v231 = vunpack.c.l.b16 %v71
    %v232 = vunpack.c.h.b16 %v71
    %v233 = vunpack.c.l.b16 %v72
    %v234 = vunpack.c.h.b16 %v72
    %v235 = vunpack.c.l.b16 %v73
    %v236 = vunpack.c.h.b16 %v73
    %v237 = vunpack.c.l.b16 %v74
    %v238 = vunpack.c.h.b16 %v74
    %v239 = vunpack.c.l.b16 %v75
    %v240 = vunpack.c.h.b16 %v75
    %v241 = vunpack.c.l.b16 %v76
    %v242 = vunpack.c.h.b16 %v76
    %v243 = vunpack.c.l.b16 %v77
    %v244 = vunpack.c.h.b16 %v77
    %v245 = vunpack.c.l.b16 %v78
    %v246 = vunpack.c.h.b16 %v78
    %v247 = vunpack.c.l.b16 %v79
    %v248 = vunpack.c.h.b16 %v79
    %v249 = vunpack.c.l.b16 %v80
    %v250 = vunpack.c.h.b16 %v80
    %v251 = vunpack.c.l.b16 %v81
    %v252 = vunpack.c.h.b16 %v81
    %v253 = vunpack.c.l.b16 %v82
    %v254 = vunpack.c.h.b16 %v82
    %v255 = vunpack.c.l.b16 %v83
    %v256 = vunpack.c.h.b16 %v83
    %v257 = vunpack.c.l.b16 %v84
    %v258 = vunpack.c.h.b16 %v84
    %v259 = vunpack.c.l.b16 %v85
    %v260 = vunpack.c.h.b16 %v85
    %v261 = vunpack.c.l.b16 %v86
    %v262 = vunpack.c.h.b16 %v86
    %v263 = vunpack.c.l.b16 %v87
    %v264 = vunpack.c.h.b16 %v87
    %v265 = vunpack.c.l.b16 %v88
    %v266 = vunpack.c.h.b16 %v88
    %v267 = vunpack.c.l.b16 %v89
    %v268 = vunpack.c.h.b16 %v89
    %v269 = vunpack.c.l.b16 %v90
    %v270 = vunpack.c.h.b16 %v90
    %v271 = vunpack.c.l.b16 %v91
    %v272 = vunpack.c.h.b16 %v91
    %v273 = vunpack.c.l.b16 %v92
    %v274 = vunpack.c.h.b16 %v92
    %v275 = vunpack.c.l.b16 %v93
    %v276 = vunpack.c.h.b16 %v93
    %v277 = vunpack.c.l.b16 %v94
    %v278 = vunpack.c.h.b16 %v94
    %v279 = vunpack.c.l.b16 %v95
    %v280 = vunpack.c.h.b16 %v95
    %v281 = vunpack.c.l.b16 %v96
    %v282 = vunpack.c.h.b16 %v96
    %v283 = vunpack.c.l.b16 %v97
    %v284 = vunpack.c.h.b16 %v97
    %v285 = vunpack.c.l.b16 %v98
    %v286 = vunpack.c.h.b16 %v98
    %v287 = vunpack.c.l.b16 %v99
    %v288 = vunpack.c.h.b16 %v99
    %v289 = vunpack.c.l.b16 %v100
    %v290 = vunpack.c.h.b16 %v100
    %v291 = vunpack.c.l.b16 %v101
    %v292 = vunpack.c.h.b16 %v101
    %v293 = vunpack.c.l.b16 %v102
    %v294 = vunpack.c.h.b16 %v102
    %v295 = vunpack.c.l.b16 %v103
    %v296 = vunpack.c.h.b16 %v103
    %v297 = vunpack.c.l.b16 %v104
    %v298 = vunpack.c.h.b16 %v104
    %v299 = vunpack.c.l.b16 %v105
    %v300 = vunpack.c.h.b16 %v105
    %v301 = vunpack.c.l.b16 %v106
    %v302 = vunpack.c.h.b16 %v106
    %v303 = vunpack.c.l.b16 %v107
    %v304 = vunpack.c.h.b16 %v107
    %v305 = vunpack.c.l.b16 %v108
    %v306 = vunpack.c.h.b16 %v108
    %v307 = vunpack.c.l.b16 %v109
    %v308 = vunpack.c.h.b16 %v109
    %v309 = vunpack.c.l.b16 %v110
    %v310 = vunpack.c.h.b16 %v110
    %v311 = vunpack.c.l.b16 %v111
    %v312 = vunpack.c.h.b16 %v111
    %v313 = vunpack.c.l.b16 %v112
    %v314 = vunpack.c.h.b16 %v112
    %v315 = vunpack.c.l.b16 %v113
    %v316 = vunpack.c.h.b16 %v113
    %v317 = vunpack.c.l.b16 %v114
    %v318 = vunpack.c.h.b16 %v114
    %v319 = vunpack.c.l.b16 %v115
    %v320 = vunpack.c.h.b16 %v115
    %v321 = vunpack.c.l.b16 %v116
    %v322 = vunpack.c.h.b16 %v116
    %v323 = vunpack.c.l.b16 %v117
    %v324 = vunpack.c.h.b16 %v117
    %v325 = vunpack.c.l.b16 %v118
    %v326 = vunpack.c.h.b16 %v118
    %v327 = vunpack.c.l.b16 %v119
    %v328 = vunpack.c.h.b16 %v119
    %v329 = vunpack.c.l.b16 %v120
    %v330 = vunpack.c.h.b16 %v120
    %v331 = vunpack.c.l.b16 %v121
    %v332 = vunpack.c.h.b16 %v121
    %v333 = vunpack.c.l.b16 %v122
    %v334 = vunpack.c.h.b16 %v122
    %v335 = vunpack.c.l.b16 %v123
    %v336 = vunpack.c.h.b16 %v123
    %v337 = vunpack.c.l.b16 %v124
    %v338 = vunpack.c.h.b16 %v124
    %v339 = vunpack.c.l.b16 %v125
    %v340 = vunpack.c.h.b16 %v125
    %v341 = vunpack.c.l.b16 %v126
    %v342 = vunpack.c.h.b16 %v126
    %v343 = vunpack.c.l.b16 %v127
    %v344 = vunpack.c.h.b16 %v127
    %v345 = vunpack.c.l.b16 %v128
    %v346 = vunpack.c.h.b16 %v128
    %v347 = vunpack.c.l.b16 %v129
    %v348 = vunpack.c.h.b16 %v129
    %v349 = vunpack.c.l.b16 %v130
    %v350 = vunpack.c.h.b16 %v130
    %v351 = vunpack.c.l.b16 %v131
    %v352 = vunpack.c.h.b16 %v131
    %v353 = vunpack.c.l.b16 %v132
    %v354 = vunpack.c.h.b16 %v132
    %v355 = vunpack.c.l.b16 %v133
    %v356 = vunpack.c.h.b16 %v133
    %v357 = vunpack.c.l.b16 %v134
    %v358 = vunpack.c.h.b16 %v134
    %v359 = vpack.c.b16 %v235, %v231
    %v360 = vpack.c.b16 %v236, %v232
    %v361 = vpack.c.b16 %v237, %v233
    %v362 = vpack.c.b16 %v238, %v234
    %v363 = vpack.c.b16 %v243, %v239
    %v364 = vpack.c.b16 %v244, %v240
    %v365 = vpack.c.b16 %v245, %v241
    %v366 = vpack.c.b16 %v246, %v242
    %v367 = vpack.c.b16 %v251, %v247
    %v368 = vpack.c.b16 %v252, %v248
    %v369 = vpack.c.b16 %v253, %v249
    %v370 = vpack.c.b16 %v254, %v250
    %v371 = vpack.c.b16 %v259, %v255
    %v372 = vpack.c.b16 %v260, %v256
    %v373 = vpack.c.b16 %v261, %v257
    %v374 = vpack.c.b16 %v262, %v258
    %v375 = vpack.c.b16 %v267, %v263
    %v376 = vpack.c.b16 %v268, %v264
    %v377 = vpack.c.b16 %v269, %v265
    %v378 = vpack.c.b16 %v270, %v266
    %v379 = vpack.c.b16 %v275, %v271
    %v380 = vpack.c.b16 %v276, %v272
    %v381 = vpack.c.b16 %v277, %v273
    %v382 = vpack.c.b16 %v278, %v274
    %v383 = vpack.c.b16 %v283, %v279
    %v384 = vpack.c.b16 %v284, %v280
    %v385 = vpack.c.b16 %v285, %v281
    %v386 = vpack.c.b16 %v286, %v282
    %v387 = vpack.c.b16 %v291, %v287
    %v388 = vpack.c.b16 %v292, %v288
    %v389 = vpack.c.b16 %v293, %v289
    %v390 = vpack.c.b16 %v294, %v290
    %v391 = vpack.c.b16 %v299, %v295
    %v392 = vpack.c.b16 %v300, %v296
    %v393 = vpack.c.b16 %v301, %v297
    %v394 = vpack.c.b16 %v302, %v298
    %v395 = vpack.c.b16 %v307, %v303
    %v396 = vpack.c.b16 %v308, %v304
    %v397 = vpack.c.b16 %v309, %v305
    %v398 = vpack.c.b16 %v310, %v306
    %v399 = vpack.c.b16 %v315, %v311
    %v400 = vpack.c.b16 %v316, %v312
    %v401 = vpack.c.b16 %v317, %v313
    %v402 = vpack.c.b16 %v318, %v314
    %v403 = vpack.c.b16 %v323, %v319
    %v404 = vpack.c.b16 %v324, %v320
    %v405 = vpack.c.b16 %v325, %v321
    %v406 = vpack.c.b16 %v326, %v322
    %v407 = vpack.c.b16 %v331, %v327
    %v408 = vpack.c.b16 %v332, %v328
    %v409 = vpack.c.b16 %v333, %v329
    %v410 = vpack.c.b16 %v334, %v330
    %v411 = vpack.c.b16 %v339, %v335
    %v412 = vpack.c.b16 %v340, %v336
    %v413 = vpack.c.b16 %v341, %v337
    %v414 = vpack.c.b16 %v342, %v338
    %v415 = vpack.c.b16 %v347, %v343
    %v416 = vpack.c.b16 %v348, %v344
    %v417 = vpack.c.b16 %v349, %v345
    %v418 = vpack.c.b16 %v350, %v346
    %v419 = vpack.c.b16 %v355, %v351
    %v420 = vpack.c.b16 %v356, %v352
    %v421 = vpack.c.b16 %v357, %v353
    %v422 = vpack.c.b16 %v358, %v354
    %487 = vmatprep.subr.bf16.mxu0 %v360
    %488 = vmatpush1.bf16.msra.mxu0 %v359
    %489 = vmatprep.subr.bf16.mxu0 %v364
    %490 = vmatpush1.bf16.msra.mxu0 %v363
    %491 = vmatprep.subr.bf16.mxu0 %v368
    %492 = vmatpush1.bf16.msra.mxu0 %v367
    %493 = vmatprep.subr.bf16.mxu0 %v372
    %494 = vmatpush1.bf16.msra.mxu0 %v371
    %495 = vmatprep.subr.bf16.mxu0 %v376
    %496 = vmatpush1.bf16.msra.mxu0 %v375
    %497 = vmatprep.subr.bf16.mxu0 %v380
    %498 = vmatpush1.bf16.msra.mxu0 %v379
    %499 = vmatprep.subr.bf16.mxu0 %v384
    %500 = vmatpush1.bf16.msra.mxu0 %v383
    %501 = vmatprep.subr.bf16.mxu0 %v388
    %502 = vmatpush1.bf16.msra.mxu0 %v387
    %503 = vmatprep.subr.bf16.mxu0 %v392
    %504 = vmatpush1.bf16.msra.mxu0 %v391
    %505 = vmatprep.subr.bf16.mxu0 %v396
    %506 = vmatpush1.bf16.msra.mxu0 %v395
    %507 = vmatprep.subr.bf16.mxu0 %v400
    %508 = vmatpush1.bf16.msra.mxu0 %v399
    %509 = vmatprep.subr.bf16.mxu0 %v404
    %510 = vmatpush1.bf16.msra.mxu0 %v403
    %511 = vmatprep.subr.bf16.mxu0 %v408
    %512 = vmatpush1.bf16.msra.mxu0 %v407
    %513 = vmatprep.subr.bf16.mxu0 %v412
    %514 = vmatpush1.bf16.msra.mxu0 %v411
    %515 = vmatprep.subr.bf16.mxu0 %v416
    %516 = vmatpush1.bf16.msra.mxu0 %v415
    %517 = vmatprep.subr.bf16.mxu0 %v420
    %518 = vmatpush1.bf16.msra.mxu0 %v419
    %519 = vmatprep.mubr.bf16.mxu0 %v164
    %520 = vmatmul.mubr.bf16.gmra.mrb[0].mxu0 %v163
    %v521 = vpop.f32.mrb[0].mxu0
    %v522 = vadd.f32 %v140, %v521
    %v523 = vpop.f32.mrb[0].mxu0
    %v524 = vadd.f32 %v144, %v523
    %v525 = vpop.f32.mrb[0].mxu0
    %v526 = vadd.f32 %v140, %v525
    %v527 = vpop.f32.mrb[0].mxu0
    %v528 = vadd.f32 %v144, %v527
    %529 = vdwg.mxu0
    %530 = vmatprep.subr.bf16.mxu0 %v362
    %531 = vmatpush1.bf16.msra.mxu0 %v361
    %532 = vmatprep.subr.bf16.mxu0 %v366
    %533 = vmatpush1.bf16.msra.mxu0 %v365
    %534 = vmatprep.subr.bf16.mxu0 %v370
    %535 = vmatpush1.bf16.msra.mxu0 %v369
    %536 = vmatprep.subr.bf16.mxu0 %v374
    %537 = vmatpush1.bf16.msra.mxu0 %v373
    %538 = vmatprep.subr.bf16.mxu0 %v378
    %539 = vmatpush1.bf16.msra.mxu0 %v377
    %540 = vmatprep.subr.bf16.mxu0 %v382
    %541 = vmatpush1.bf16.msra.mxu0 %v381
    %542 = vmatprep.subr.bf16.mxu0 %v386
    %543 = vmatpush1.bf16.msra.mxu0 %v385
    %544 = vmatprep.subr.bf16.mxu0 %v390
    %545 = vmatpush1.bf16.msra.mxu0 %v389
    %546 = vmatprep.subr.bf16.mxu0 %v394
    %547 = vmatpush1.bf16.msra.mxu0 %v393
    %548 = vmatprep.subr.bf16.mxu0 %v398
    %549 = vmatpush1.bf16.msra.mxu0 %v397
    %550 = vmatprep.subr.bf16.mxu0 %v402
    %551 = vmatpush1.bf16.msra.mxu0 %v401
    %552 = vmatprep.subr.bf16.mxu0 %v406
    %553 = vmatpush1.bf16.msra.mxu0 %v405
    %554 = vmatprep.subr.bf16.mxu0 %v410
    %555 = vmatpush1.bf16.msra.mxu0 %v409
    %556 = vmatprep.subr.bf16.mxu0 %v414
    %557 = vmatpush1.bf16.msra.mxu0 %v413
    %558 = vmatprep.subr.bf16.mxu0 %v418
    %559 = vmatpush1.bf16.msra.mxu0 %v417
    %560 = vmatprep.subr.bf16.mxu0 %v422
    %561 = vmatpush1.bf16.msra.mxu0 %v421
    %562 = vmatprep.mubr.bf16.mxu0 %v164
    %563 = vmatmul.mubr.bf16.gmra.mrb[0].mxu0 %v163
    %v564 = vpop.f32.mrb[0].mxu0
    %v565 = vadd.f32 %v148, %v564
    %v566 = vpop.f32.mrb[0].mxu0
    %v567 = vadd.f32 %v152, %v566
    %v568 = vpop.f32.mrb[0].mxu0
    %v569 = vadd.f32 %v148, %v568
    %v570 = vpop.f32.mrb[0].mxu0
    %v571 = vadd.f32 %v152, %v570
    %572 = vdwg.mxu0
    %vm573 = vcmp.gt.f32.partialorder %v522, 0.0
    %vm574 = vcmp.gt.f32.partialorder %v524, 0.0
    %vm575 = vcmp.gt.f32.partialorder %v565, 0.0
    %vm576 = vcmp.gt.f32.partialorder %v567, 0.0
    %vm577 = vcmp.gt.f32.partialorder %v526, 0.0
    %vm578 = vcmp.gt.f32.partialorder %v528, 0.0
    %vm579 = vcmp.gt.f32.partialorder %v569, 0.0
    %vm580 = vcmp.gt.f32.partialorder %v571, 0.0
    %v581 = vmul.f32 %v522, 0.2
    %v582 = vmul.f32 %v524, 0.2
    %v583 = vmul.f32 %v565, 0.2
    %v584 = vmul.f32 %v567, 0.2
    %v585 = vmul.f32 %v526, 0.2
    %v586 = vmul.f32 %v528, 0.2
    %v587 = vmul.f32 %v569, 0.2
    %v588 = vmul.f32 %v571, 0.2
    %v589 = vsel %vm573, %v522, %v581
    %v590 = vsel %vm574, %v524, %v582
    %v591 = vsel %vm575, %v565, %v583
    %v592 = vsel %vm576, %v567, %v584
    %v593 = vsel %vm577, %v526, %v585
    %v594 = vsel %vm578, %v528, %v586
    %v595 = vsel %vm579, %v569, %v587
    %v596 = vsel %vm580, %v571, %v588
    %v597 = vpack.c.bf16 %v593, %v589
    %v598 = vpack.c.bf16 %v594, %v590
    %v599 = vpack.c.bf16 %v595, %v591
    %v600 = vpack.c.bf16 %v596, %v592
    %v601 = vld [vmem:[#allocation5] sm:$0xff]
    %v602 = vld [vmem:[#allocation5 + $0x8] sm:$0xff]
    %v603 = vld [vmem:[#allocation5 + $0x10] sm:$0xff]
    %v604 = vld [vmem:[#allocation5 + $0x18] sm:$0xff]
    %v605 = vld [vmem:[#allocation5 + $0x20] sm:$0xff]
    %v606 = vld [vmem:[#allocation5 + $0x28] sm:$0xff]
    %v607 = vld [vmem:[#allocation5 + $0x30] sm:$0xff]
    %v608 = vld [vmem:[#allocation5 + $0x38] sm:$0xff]
    %v609 = vld [vmem:[#allocation5 + $0x40] sm:$0xff]
    %v610 = vld [vmem:[#allocation5 + $0x48] sm:$0xff]
    %v611 = vld [vmem:[#allocation5 + $0x50] sm:$0xff]
    %v612 = vld [vmem:[#allocation5 + $0x58] sm:$0xff]
    %v613 = vld [vmem:[#allocation5 + $0x60] sm:$0xff]
    %v614 = vld [vmem:[#allocation5 + $0x68] sm:$0xff]
    %v615 = vld [vmem:[#allocation5 + $0x70] sm:$0xff]
    %v616 = vld [vmem:[#allocation5 + $0x78] sm:$0xff]
    %v617 = vld [vmem:[#allocation5 + $0x80] sm:$0xff]
    %v618 = vld [vmem:[#allocation5 + $0x88] sm:$0xff]
    %v619 = vld [vmem:[#allocation5 + $0x90] sm:$0xff]
    %v620 = vld [vmem:[#allocation5 + $0x98] sm:$0xff]
    %v621 = vld [vmem:[#allocation5 + $0xa0] sm:$0xff]
    %v622 = vld [vmem:[#allocation5 + $0xa8] sm:$0xff]
    %v623 = vld [vmem:[#allocation5 + $0xb0] sm:$0xff]
    %v624 = vld [vmem:[#allocation5 + $0xb8] sm:$0xff]
    %v625 = vld [vmem:[#allocation5 + $0xc0] sm:$0xff]
    %v626 = vld [vmem:[#allocation5 + $0xc8] sm:$0xff]
    %v627 = vld [vmem:[#allocation5 + $0xd0] sm:$0xff]
    %v628 = vld [vmem:[#allocation5 + $0xd8] sm:$0xff]
    %v629 = vld [vmem:[#allocation5 + $0xe0] sm:$0xff]
    %v630 = vld [vmem:[#allocation5 + $0xe8] sm:$0xff]
    %v631 = vld [vmem:[#allocation5 + $0xf0] sm:$0xff]
    %v632 = vld [vmem:[#allocation5 + $0xf8] sm:$0xff]
    %v633 = vld [vmem:[#allocation5 + $0x100] sm:$0xff]
    %v634 = vld [vmem:[#allocation5 + $0x108] sm:$0xff]
    %v635 = vld [vmem:[#allocation5 + $0x110] sm:$0xff]
    %v636 = vld [vmem:[#allocation5 + $0x118] sm:$0xff]
    %v637 = vld [vmem:[#allocation5 + $0x120] sm:$0xff]
    %v638 = vld [vmem:[#allocation5 + $0x128] sm:$0xff]
    %v639 = vld [vmem:[#allocation5 + $0x130] sm:$0xff]
    %v640 = vld [vmem:[#allocation5 + $0x138] sm:$0xff]
    %v641 = vld [vmem:[#allocation5 + $0x140] sm:$0xff]
    %v642 = vld [vmem:[#allocation5 + $0x148] sm:$0xff]
    %v643 = vld [vmem:[#allocation5 + $0x150] sm:$0xff]
    %v644 = vld [vmem:[#allocation5 + $0x158] sm:$0xff]
    %v645 = vld [vmem:[#allocation5 + $0x160] sm:$0xff]
    %v646 = vld [vmem:[#allocation5 + $0x168] sm:$0xff]
    %v647 = vld [vmem:[#allocation5 + $0x170] sm:$0xff]
    %v648 = vld [vmem:[#allocation5 + $0x178] sm:$0xff]
    %v649 = vld [vmem:[#allocation5 + $0x180] sm:$0xff]
    %v650 = vld [vmem:[#allocation5 + $0x188] sm:$0xff]
    %v651 = vld [vmem:[#allocation5 + $0x190] sm:$0xff]
    %v652 = vld [vmem:[#allocation5 + $0x198] sm:$0xff]
    %v653 = vld [vmem:[#allocation5 + $0x1a0] sm:$0xff]
    %v654 = vld [vmem:[#allocation5 + $0x1a8] sm:$0xff]
    %v655 = vld [vmem:[#allocation5 + $0x1b0] sm:$0xff]
    %v656 = vld [vmem:[#allocation5 + $0x1b8] sm:$0xff]
    %v657 = vld [vmem:[#allocation5 + $0x1c0] sm:$0xff]
    %v658 = vld [vmem:[#allocation5 + $0x1c8] sm:$0xff]
    %v659 = vld [vmem:[#allocation5 + $0x1d0] sm:$0xff]
    %v660 = vld [vmem:[#allocation5 + $0x1d8] sm:$0xff]
    %v661 = vld [vmem:[#allocation5 + $0x1e0] sm:$0xff]
    %v662 = vld [vmem:[#allocation5 + $0x1e8] sm:$0xff]
    %v663 = vld [vmem:[#allocation5 + $0x1f0] sm:$0xff]
    %v664 = vld [vmem:[#allocation5 + $0x1f8] sm:$0xff]
    %v665 = vld [vmem:[#allocation5 + $0x200] sm:$0xff]
    %v666 = vld [vmem:[#allocation5 + $0x208] sm:$0xff]
    %v667 = vld [vmem:[#allocation5 + $0x210] sm:$0xff]
    %v668 = vld [vmem:[#allocation5 + $0x218] sm:$0xff]
    %v669 = vld [vmem:[#allocation5 + $0x220] sm:$0xff]
    %v670 = vld [vmem:[#allocation5 + $0x228] sm:$0xff]
    %v671 = vld [vmem:[#allocation5 + $0x230] sm:$0xff]
    %v672 = vld [vmem:[#allocation5 + $0x238] sm:$0xff]
    %v673 = vld [vmem:[#allocation5 + $0x240] sm:$0xff]
    %v674 = vld [vmem:[#allocation5 + $0x248] sm:$0xff]
    %v675 = vld [vmem:[#allocation5 + $0x250] sm:$0xff]
    %v676 = vld [vmem:[#allocation5 + $0x258] sm:$0xff]
    %v677 = vld [vmem:[#allocation5 + $0x260] sm:$0xff]
    %v678 = vld [vmem:[#allocation5 + $0x268] sm:$0xff]
    %v679 = vld [vmem:[#allocation5 + $0x270] sm:$0xff]
    %v680 = vld [vmem:[#allocation5 + $0x278] sm:$0xff]
    %v681 = vld [vmem:[#allocation5 + $0x280] sm:$0xff]
    %v682 = vld [vmem:[#allocation5 + $0x288] sm:$0xff]
    %v683 = vld [vmem:[#allocation5 + $0x290] sm:$0xff]
    %v684 = vld [vmem:[#allocation5 + $0x298] sm:$0xff]
    %v685 = vld [vmem:[#allocation5 + $0x2a0] sm:$0xff]
    %v686 = vld [vmem:[#allocation5 + $0x2a8] sm:$0xff]
    %v687 = vld [vmem:[#allocation5 + $0x2b0] sm:$0xff]
    %v688 = vld [vmem:[#allocation5 + $0x2b8] sm:$0xff]
    %v689 = vld [vmem:[#allocation5 + $0x2c0] sm:$0xff]
    %v690 = vld [vmem:[#allocation5 + $0x2c8] sm:$0xff]
    %v691 = vld [vmem:[#allocation5 + $0x2d0] sm:$0xff]
    %v692 = vld [vmem:[#allocation5 + $0x2d8] sm:$0xff]
    %v693 = vld [vmem:[#allocation5 + $0x2e0] sm:$0xff]
    %v694 = vld [vmem:[#allocation5 + $0x2e8] sm:$0xff]
    %v695 = vld [vmem:[#allocation5 + $0x2f0] sm:$0xff]
    %v696 = vld [vmem:[#allocation5 + $0x2f8] sm:$0xff]
    %v697 = vld [vmem:[#allocation5 + $0x300] sm:$0xff]
    %v698 = vld [vmem:[#allocation5 + $0x308] sm:$0xff]
    %v699 = vld [vmem:[#allocation5 + $0x310] sm:$0xff]
    %v700 = vld [vmem:[#allocation5 + $0x318] sm:$0xff]
    %v701 = vld [vmem:[#allocation5 + $0x320] sm:$0xff]
    %v702 = vld [vmem:[#allocation5 + $0x328] sm:$0xff]
    %v703 = vld [vmem:[#allocation5 + $0x330] sm:$0xff]
    %v704 = vld [vmem:[#allocation5 + $0x338] sm:$0xff]
    %v705 = vld [vmem:[#allocation5 + $0x340] sm:$0xff]
    %v706 = vld [vmem:[#allocation5 + $0x348] sm:$0xff]
    %v707 = vld [vmem:[#allocation5 + $0x350] sm:$0xff]
    %v708 = vld [vmem:[#allocation5 + $0x358] sm:$0xff]
    %v709 = vld [vmem:[#allocation5 + $0x360] sm:$0xff]
    %v710 = vld [vmem:[#allocation5 + $0x368] sm:$0xff]
    %v711 = vld [vmem:[#allocation5 + $0x370] sm:$0xff]
    %v712 = vld [vmem:[#allocation5 + $0x378] sm:$0xff]
    %v713 = vld [vmem:[#allocation5 + $0x380] sm:$0xff]
    %v714 = vld [vmem:[#allocation5 + $0x388] sm:$0xff]
    %v715 = vld [vmem:[#allocation5 + $0x390] sm:$0xff]
    %v716 = vld [vmem:[#allocation5 + $0x398] sm:$0xff]
    %v717 = vld [vmem:[#allocation5 + $0x3a0] sm:$0xff]
    %v718 = vld [vmem:[#allocation5 + $0x3a8] sm:$0xff]
    %v719 = vld [vmem:[#allocation5 + $0x3b0] sm:$0xff]
    %v720 = vld [vmem:[#allocation5 + $0x3b8] sm:$0xff]
    %v721 = vld [vmem:[#allocation5 + $0x3c0] sm:$0xff]
    %v722 = vld [vmem:[#allocation5 + $0x3c8] sm:$0xff]
    %v723 = vld [vmem:[#allocation5 + $0x3d0] sm:$0xff]
    %v724 = vld [vmem:[#allocation5 + $0x3d8] sm:$0xff]
    %v725 = vld [vmem:[#allocation5 + $0x3e0] sm:$0xff]
    %v726 = vld [vmem:[#allocation5 + $0x3e8] sm:$0xff]
    %v727 = vld [vmem:[#allocation5 + $0x3f0] sm:$0xff]
    %v728 = vld [vmem:[#allocation5 + $0x3f8] sm:$0xff]
    %v729 = vld [vmem:[%s4] sm:$0xf]
    %v731 = vlaneseq
    %v732 = vshrl.u32 %v731, 7
    %v733 = vsub.s32 0, %v732
    %v734 = vrot.slane %v729, %v733
    %v735 = vlaneseq
    %v736 = vshrl.u32 %v735, 7
    %v737 = vsub.s32 1, %v736
    %v738 = vrot.slane %v729, %v737
    %v739 = vlaneseq
    %v740 = vshrl.u32 %v739, 7
    %v741 = vsub.s32 2, %v740
    %v742 = vrot.slane %v729, %v741
    %v743 = vlaneseq
    %v744 = vshrl.u32 %v743, 7
    %v745 = vsub.s32 3, %v744
    %v746 = vrot.slane %v729, %v745
    %v879 = vunpack.c.l.b16 %v601
    %v880 = vunpack.c.h.b16 %v601
    %v881 = vunpack.c.l.b16 %v602
    %v882 = vunpack.c.h.b16 %v602
    %v883 = vunpack.c.l.b16 %v603
    %v884 = vunpack.c.h.b16 %v603
    %v885 = vunpack.c.l.b16 %v604
    %v886 = vunpack.c.h.b16 %v604
    %v887 = vunpack.c.l.b16 %v605
    %v888 = vunpack.c.h.b16 %v605
    %v889 = vunpack.c.l.b16 %v606
    %v890 = vunpack.c.h.b16 %v606
    %v891 = vunpack.c.l.b16 %v607
    %v892 = vunpack.c.h.b16 %v607
    %v893 = vunpack.c.l.b16 %v608
    %v894 = vunpack.c.h.b16 %v608
    %v895 = vunpack.c.l.b16 %v609
    %v896 = vunpack.c.h.b16 %v609
    %v897 = vunpack.c.l.b16 %v610
    %v898 = vunpack.c.h.b16 %v610
    %v899 = vunpack.c.l.b16 %v611
    %v900 = vunpack.c.h.b16 %v611
    %v901 = vunpack.c.l.b16 %v612
    %v902 = vunpack.c.h.b16 %v612
    %v903 = vunpack.c.l.b16 %v613
    %v904 = vunpack.c.h.b16 %v613
    %v905 = vunpack.c.l.b16 %v614
    %v906 = vunpack.c.h.b16 %v614
    %v907 = vunpack.c.l.b16 %v615
    %v908 = vunpack.c.h.b16 %v615
    %v909 = vunpack.c.l.b16 %v616
    %v910 = vunpack.c.h.b16 %v616
    %v911 = vunpack.c.l.b16 %v617
    %v912 = vunpack.c.h.b16 %v617
    %v913 = vunpack.c.l.b16 %v618
    %v914 = vunpack.c.h.b16 %v618
    %v915 = vunpack.c.l.b16 %v619
    %v916 = vunpack.c.h.b16 %v619
    %v917 = vunpack.c.l.b16 %v620
    %v918 = vunpack.c.h.b16 %v620
    %v919 = vunpack.c.l.b16 %v621
    %v920 = vunpack.c.h.b16 %v621
    %v921 = vunpack.c.l.b16 %v622
    %v922 = vunpack.c.h.b16 %v622
    %v923 = vunpack.c.l.b16 %v623
    %v924 = vunpack.c.h.b16 %v623
    %v925 = vunpack.c.l.b16 %v624
    %v926 = vunpack.c.h.b16 %v624
    %v927 = vunpack.c.l.b16 %v625
    %v928 = vunpack.c.h.b16 %v625
    %v929 = vunpack.c.l.b16 %v626
    %v930 = vunpack.c.h.b16 %v626
    %v931 = vunpack.c.l.b16 %v627
    %v932 = vunpack.c.h.b16 %v627
    %v933 = vunpack.c.l.b16 %v628
    %v934 = vunpack.c.h.b16 %v628
    %v935 = vunpack.c.l.b16 %v629
    %v936 = vunpack.c.h.b16 %v629
    %v937 = vunpack.c.l.b16 %v630
    %v938 = vunpack.c.h.b16 %v630
    %v939 = vunpack.c.l.b16 %v631
    %v940 = vunpack.c.h.b16 %v631
    %v941 = vunpack.c.l.b16 %v632
    %v942 = vunpack.c.h.b16 %v632
    %v943 = vunpack.c.l.b16 %v633
    %v944 = vunpack.c.h.b16 %v633
    %v945 = vunpack.c.l.b16 %v634
    %v946 = vunpack.c.h.b16 %v634
    %v947 = vunpack.c.l.b16 %v635
    %v948 = vunpack.c.h.b16 %v635
    %v949 = vunpack.c.l.b16 %v636
    %v950 = vunpack.c.h.b16 %v636
    %v951 = vunpack.c.l.b16 %v637
    %v952 = vunpack.c.h.b16 %v637
    %v953 = vunpack.c.l.b16 %v638
    %v954 = vunpack.c.h.b16 %v638
    %v955 = vunpack.c.l.b16 %v639
    %v956 = vunpack.c.h.b16 %v639
    %v957 = vunpack.c.l.b16 %v640
    %v958 = vunpack.c.h.b16 %v640
    %v959 = vunpack.c.l.b16 %v641
    %v960 = vunpack.c.h.b16 %v641
    %v961 = vunpack.c.l.b16 %v642
    %v962 = vunpack.c.h.b16 %v642
    %v963 = vunpack.c.l.b16 %v643
    %v964 = vunpack.c.h.b16 %v643
    %v965 = vunpack.c.l.b16 %v644
    %v966 = vunpack.c.h.b16 %v644
    %v967 = vunpack.c.l.b16 %v645
    %v968 = vunpack.c.h.b16 %v645
    %v969 = vunpack.c.l.b16 %v646
    %v970 = vunpack.c.h.b16 %v646
    %v971 = vunpack.c.l.b16 %v647
    %v972 = vunpack.c.h.b16 %v647
    %v973 = vunpack.c.l.b16 %v648
    %v974 = vunpack.c.h.b16 %v648
    %v975 = vunpack.c.l.b16 %v649
    %v976 = vunpack.c.h.b16 %v649
    %v977 = vunpack.c.l.b16 %v650
    %v978 = vunpack.c.h.b16 %v650
    %v979 = vunpack.c.l.b16 %v651
    %v980 = vunpack.c.h.b16 %v651
    %v981 = vunpack.c.l.b16 %v652
    %v982 = vunpack.c.h.b16 %v652
    %v983 = vunpack.c.l.b16 %v653
    %v984 = vunpack.c.h.b16 %v653
    %v985 = vunpack.c.l.b16 %v654
    %v986 = vunpack.c.h.b16 %v654
    %v987 = vunpack.c.l.b16 %v655
    %v988 = vunpack.c.h.b16 %v655
    %v989 = vunpack.c.l.b16 %v656
    %v990 = vunpack.c.h.b16 %v656
    %v991 = vunpack.c.l.b16 %v657
    %v992 = vunpack.c.h.b16 %v657
    %v993 = vunpack.c.l.b16 %v658
    %v994 = vunpack.c.h.b16 %v658
    %v995 = vunpack.c.l.b16 %v659
    %v996 = vunpack.c.h.b16 %v659
    %v997 = vunpack.c.l.b16 %v660
    %v998 = vunpack.c.h.b16 %v660
    %v999 = vunpack.c.l.b16 %v661
    %v1000 = vunpack.c.h.b16 %v661
    %v1001 = vunpack.c.l.b16 %v662
    %v1002 = vunpack.c.h.b16 %v662
    %v1003 = vunpack.c.l.b16 %v663
    %v1004 = vunpack.c.h.b16 %v663
    %v1005 = vunpack.c.l.b16 %v664
    %v1006 = vunpack.c.h.b16 %v664
    %v1007 = vunpack.c.l.b16 %v665
    %v1008 = vunpack.c.h.b16 %v665
    %v1009 = vunpack.c.l.b16 %v666
    %v1010 = vunpack.c.h.b16 %v666
    %v1011 = vunpack.c.l.b16 %v667
    %v1012 = vunpack.c.h.b16 %v667
    %v1013 = vunpack.c.l.b16 %v668
    %v1014 = vunpack.c.h.b16 %v668
    %v1015 = vunpack.c.l.b16 %v669
    %v1016 = vunpack.c.h.b16 %v669
    %v1017 = vunpack.c.l.b16 %v670
    %v1018 = vunpack.c.h.b16 %v670
    %v1019 = vunpack.c.l.b16 %v671
    %v1020 = vunpack.c.h.b16 %v671
    %v1021 = vunpack.c.l.b16 %v672
    %v1022 = vunpack.c.h.b16 %v672
    %v1023 = vunpack.c.l.b16 %v673
    %v1024 = vunpack.c.h.b16 %v673
    %v1025 = vunpack.c.l.b16 %v674
    %v1026 = vunpack.c.h.b16 %v674
    %v1027 = vunpack.c.l.b16 %v675
    %v1028 = vunpack.c.h.b16 %v675
    %v1029 = vunpack.c.l.b16 %v676
    %v1030 = vunpack.c.h.b16 %v676
    %v1031 = vunpack.c.l.b16 %v677
    %v1032 = vunpack.c.h.b16 %v677
    %v1033 = vunpack.c.l.b16 %v678
    %v1034 = vunpack.c.h.b16 %v678
    %v1035 = vunpack.c.l.b16 %v679
    %v1036 = vunpack.c.h.b16 %v679
    %v1037 = vunpack.c.l.b16 %v680
    %v1038 = vunpack.c.h.b16 %v680
    %v1039 = vunpack.c.l.b16 %v681
    %v1040 = vunpack.c.h.b16 %v681
    %v1041 = vunpack.c.l.b16 %v682
    %v1042 = vunpack.c.h.b16 %v682
    %v1043 = vunpack.c.l.b16 %v683
    %v1044 = vunpack.c.h.b16 %v683
    %v1045 = vunpack.c.l.b16 %v684
    %v1046 = vunpack.c.h.b16 %v684
    %v1047 = vunpack.c.l.b16 %v685
    %v1048 = vunpack.c.h.b16 %v685
    %v1049 = vunpack.c.l.b16 %v686
    %v1050 = vunpack.c.h.b16 %v686
    %v1051 = vunpack.c.l.b16 %v687
    %v1052 = vunpack.c.h.b16 %v687
    %v1053 = vunpack.c.l.b16 %v688
    %v1054 = vunpack.c.h.b16 %v688
    %v1055 = vunpack.c.l.b16 %v689
    %v1056 = vunpack.c.h.b16 %v689
    %v1057 = vunpack.c.l.b16 %v690
    %v1058 = vunpack.c.h.b16 %v690
    %v1059 = vunpack.c.l.b16 %v691
    %v1060 = vunpack.c.h.b16 %v691
    %v1061 = vunpack.c.l.b16 %v692
    %v1062 = vunpack.c.h.b16 %v692
    %v1063 = vunpack.c.l.b16 %v693
    %v1064 = vunpack.c.h.b16 %v693
    %v1065 = vunpack.c.l.b16 %v694
    %v1066 = vunpack.c.h.b16 %v694
    %v1067 = vunpack.c.l.b16 %v695
    %v1068 = vunpack.c.h.b16 %v695
    %v1069 = vunpack.c.l.b16 %v696
    %v1070 = vunpack.c.h.b16 %v696
    %v1071 = vunpack.c.l.b16 %v697
    %v1072 = vunpack.c.h.b16 %v697
    %v1073 = vunpack.c.l.b16 %v698
    %v1074 = vunpack.c.h.b16 %v698
    %v1075 = vunpack.c.l.b16 %v699
    %v1076 = vunpack.c.h.b16 %v699
    %v1077 = vunpack.c.l.b16 %v700
    %v1078 = vunpack.c.h.b16 %v700
    %v1079 = vunpack.c.l.b16 %v701
    %v1080 = vunpack.c.h.b16 %v701
    %v1081 = vunpack.c.l.b16 %v702
    %v1082 = vunpack.c.h.b16 %v702
    %v1083 = vunpack.c.l.b16 %v703
    %v1084 = vunpack.c.h.b16 %v703
    %v1085 = vunpack.c.l.b16 %v704
    %v1086 = vunpack.c.h.b16 %v704
    %v1087 = vunpack.c.l.b16 %v705
    %v1088 = vunpack.c.h.b16 %v705
    %v1089 = vunpack.c.l.b16 %v706
    %v1090 = vunpack.c.h.b16 %v706
    %v1091 = vunpack.c.l.b16 %v707
    %v1092 = vunpack.c.h.b16 %v707
    %v1093 = vunpack.c.l.b16 %v708
    %v1094 = vunpack.c.h.b16 %v708
    %v1095 = vunpack.c.l.b16 %v709
    %v1096 = vunpack.c.h.b16 %v709
    %v1097 = vunpack.c.l.b16 %v710
    %v1098 = vunpack.c.h.b16 %v710
    %v1099 = vunpack.c.l.b16 %v711
    %v1100 = vunpack.c.h.b16 %v711
    %v1101 = vunpack.c.l.b16 %v712
    %v1102 = vunpack.c.h.b16 %v712
    %v1103 = vunpack.c.l.b16 %v713
    %v1104 = vunpack.c.h.b16 %v713
    %v1105 = vunpack.c.l.b16 %v714
    %v1106 = vunpack.c.h.b16 %v714
    %v1107 = vunpack.c.l.b16 %v715
    %v1108 = vunpack.c.h.b16 %v715
    %v1109 = vunpack.c.l.b16 %v716
    %v1110 = vunpack.c.h.b16 %v716
    %v1111 = vunpack.c.l.b16 %v717
    %v1112 = vunpack.c.h.b16 %v717
    %v1113 = vunpack.c.l.b16 %v718
    %v1114 = vunpack.c.h.b16 %v718
    %v1115 = vunpack.c.l.b16 %v719
    %v1116 = vunpack.c.h.b16 %v719
    %v1117 = vunpack.c.l.b16 %v720
    %v1118 = vunpack.c.h.b16 %v720
    %v1119 = vunpack.c.l.b16 %v721
    %v1120 = vunpack.c.h.b16 %v721
    %v1121 = vunpack.c.l.b16 %v722
    %v1122 = vunpack.c.h.b16 %v722
    %v1123 = vunpack.c.l.b16 %v723
    %v1124 = vunpack.c.h.b16 %v723
    %v1125 = vunpack.c.l.b16 %v724
    %v1126 = vunpack.c.h.b16 %v724
    %v1127 = vunpack.c.l.b16 %v725
    %v1128 = vunpack.c.h.b16 %v725
    %v1129 = vunpack.c.l.b16 %v726
    %v1130 = vunpack.c.h.b16 %v726
    %v1131 = vunpack.c.l.b16 %v727
    %v1132 = vunpack.c.h.b16 %v727
    %v1133 = vunpack.c.l.b16 %v728
    %v1134 = vunpack.c.h.b16 %v728
    %v1135 = vpack.c.b16 %v883, %v879
    %v1136 = vpack.c.b16 %v884, %v880
    %v1137 = vpack.c.b16 %v885, %v881
    %v1138 = vpack.c.b16 %v886, %v882
    %v1139 = vpack.c.b16 %v891, %v887
    %v1140 = vpack.c.b16 %v892, %v888
    %v1141 = vpack.c.b16 %v893, %v889
    %v1142 = vpack.c.b16 %v894, %v890
    %v1143 = vpack.c.b16 %v899, %v895
    %v1144 = vpack.c.b16 %v900, %v896
    %v1145 = vpack.c.b16 %v901, %v897
    %v1146 = vpack.c.b16 %v902, %v898
    %v1147 = vpack.c.b16 %v907, %v903
    %v1148 = vpack.c.b16 %v908, %v904
    %v1149 = vpack.c.b16 %v909, %v905
    %v1150 = vpack.c.b16 %v910, %v906
    %v1151 = vpack.c.b16 %v915, %v911
    %v1152 = vpack.c.b16 %v916, %v912
    %v1153 = vpack.c.b16 %v917, %v913
    %v1154 = vpack.c.b16 %v918, %v914
    %v1155 = vpack.c.b16 %v923, %v919
    %v1156 = vpack.c.b16 %v924, %v920
    %v1157 = vpack.c.b16 %v925, %v921
    %v1158 = vpack.c.b16 %v926, %v922
    %v1159 = vpack.c.b16 %v931, %v927
    %v1160 = vpack.c.b16 %v932, %v928
    %v1161 = vpack.c.b16 %v933, %v929
    %v1162 = vpack.c.b16 %v934, %v930
    %v1163 = vpack.c.b16 %v939, %v935
    %v1164 = vpack.c.b16 %v940, %v936
    %v1165 = vpack.c.b16 %v941, %v937
    %v1166 = vpack.c.b16 %v942, %v938
    %v1167 = vpack.c.b16 %v947, %v943
    %v1168 = vpack.c.b16 %v948, %v944
    %v1169 = vpack.c.b16 %v949, %v945
    %v1170 = vpack.c.b16 %v950, %v946
    %v1171 = vpack.c.b16 %v955, %v951
    %v1172 = vpack.c.b16 %v956, %v952
    %v1173 = vpack.c.b16 %v957, %v953
    %v1174 = vpack.c.b16 %v958, %v954
    %v1175 = vpack.c.b16 %v963, %v959
    %v1176 = vpack.c.b16 %v964, %v960
    %v1177 = vpack.c.b16 %v965, %v961
    %v1178 = vpack.c.b16 %v966, %v962
    %v1179 = vpack.c.b16 %v971, %v967
    %v1180 = vpack.c.b16 %v972, %v968
    %v1181 = vpack.c.b16 %v973, %v969
    %v1182 = vpack.c.b16 %v974, %v970
    %v1183 = vpack.c.b16 %v979, %v975
    %v1184 = vpack.c.b16 %v980, %v976
    %v1185 = vpack.c.b16 %v981, %v977
    %v1186 = vpack.c.b16 %v982, %v978
    %v1187 = vpack.c.b16 %v987, %v983
    %v1188 = vpack.c.b16 %v988, %v984
    %v1189 = vpack.c.b16 %v989, %v985
    %v1190 = vpack.c.b16 %v990, %v986
    %v1191 = vpack.c.b16 %v995, %v991
    %v1192 = vpack.c.b16 %v996, %v992
    %v1193 = vpack.c.b16 %v997, %v993
    %v1194 = vpack.c.b16 %v998, %v994
    %v1195 = vpack.c.b16 %v1003, %v999
    %v1196 = vpack.c.b16 %v1004, %v1000
    %v1197 = vpack.c.b16 %v1005, %v1001
    %v1198 = vpack.c.b16 %v1006, %v1002
    %v1199 = vpack.c.b16 %v1011, %v1007
    %v1200 = vpack.c.b16 %v1012, %v1008
    %v1201 = vpack.c.b16 %v1013, %v1009
    %v1202 = vpack.c.b16 %v1014, %v1010
    %v1203 = vpack.c.b16 %v1019, %v1015
    %v1204 = vpack.c.b16 %v1020, %v1016
    %v1205 = vpack.c.b16 %v1021, %v1017
    %v1206 = vpack.c.b16 %v1022, %v1018
    %v1207 = vpack.c.b16 %v1027, %v1023
    %v1208 = vpack.c.b16 %v1028, %v1024
    %v1209 = vpack.c.b16 %v1029, %v1025
    %v1210 = vpack.c.b16 %v1030, %v1026
    %v1211 = vpack.c.b16 %v1035, %v1031
    %v1212 = vpack.c.b16 %v1036, %v1032
    %v1213 = vpack.c.b16 %v1037, %v1033
    %v1214 = vpack.c.b16 %v1038, %v1034
    %v1215 = vpack.c.b16 %v1043, %v1039
    %v1216 = vpack.c.b16 %v1044, %v1040
    %v1217 = vpack.c.b16 %v1045, %v1041
    %v1218 = vpack.c.b16 %v1046, %v1042
    %v1219 = vpack.c.b16 %v1051, %v1047
    %v1220 = vpack.c.b16 %v1052, %v1048
    %v1221 = vpack.c.b16 %v1053, %v1049
    %v1222 = vpack.c.b16 %v1054, %v1050
    %v1223 = vpack.c.b16 %v1059, %v1055
    %v1224 = vpack.c.b16 %v1060, %v1056
    %v1225 = vpack.c.b16 %v1061, %v1057
    %v1226 = vpack.c.b16 %v1062, %v1058
    %v1227 = vpack.c.b16 %v1067, %v1063
    %v1228 = vpack.c.b16 %v1068, %v1064
    %v1229 = vpack.c.b16 %v1069, %v1065
    %v1230 = vpack.c.b16 %v1070, %v1066
    %v1231 = vpack.c.b16 %v1075, %v1071
    %v1232 = vpack.c.b16 %v1076, %v1072
    %v1233 = vpack.c.b16 %v1077, %v1073
    %v1234 = vpack.c.b16 %v1078, %v1074
    %v1235 = vpack.c.b16 %v1083, %v1079
    %v1236 = vpack.c.b16 %v1084, %v1080
    %v1237 = vpack.c.b16 %v1085, %v1081
    %v1238 = vpack.c.b16 %v1086, %v1082
    %v1239 = vpack.c.b16 %v1091, %v1087
    %v1240 = vpack.c.b16 %v1092, %v1088
    %v1241 = vpack.c.b16 %v1093, %v1089
    %v1242 = vpack.c.b16 %v1094, %v1090
    %v1243 = vpack.c.b16 %v1099, %v1095
    %v1244 = vpack.c.b16 %v1100, %v1096
    %v1245 = vpack.c.b16 %v1101, %v1097
    %v1246 = vpack.c.b16 %v1102, %v1098
    %v1247 = vpack.c.b16 %v1107, %v1103
    %v1248 = vpack.c.b16 %v1108, %v1104
    %v1249 = vpack.c.b16 %v1109, %v1105
    %v1250 = vpack.c.b16 %v1110, %v1106
    %v1251 = vpack.c.b16 %v1115, %v1111
    %v1252 = vpack.c.b16 %v1116, %v1112
    %v1253 = vpack.c.b16 %v1117, %v1113
    %v1254 = vpack.c.b16 %v1118, %v1114
    %v1255 = vpack.c.b16 %v1123, %v1119
    %v1256 = vpack.c.b16 %v1124, %v1120
    %v1257 = vpack.c.b16 %v1125, %v1121
    %v1258 = vpack.c.b16 %v1126, %v1122
    %v1259 = vpack.c.b16 %v1131, %v1127
    %v1260 = vpack.c.b16 %v1132, %v1128
    %v1261 = vpack.c.b16 %v1133, %v1129
    %v1262 = vpack.c.b16 %v1134, %v1130
    %1391 = vmatprep.subr.bf16.mxu0 %v1136
    %1392 = vmatpush1.bf16.msra.mxu0 %v1135
    %1393 = vmatprep.subr.bf16.mxu0 %v1140
    %1394 = vmatpush1.bf16.msra.mxu0 %v1139
    %1395 = vmatprep.subr.bf16.mxu0 %v1144
    %1396 = vmatpush1.bf16.msra.mxu0 %v1143
    %1397 = vmatprep.subr.bf16.mxu0 %v1148
    %1398 = vmatpush1.bf16.msra.mxu0 %v1147
    %1399 = vmatprep.subr.bf16.mxu0 %v1152
    %1400 = vmatpush1.bf16.msra.mxu0 %v1151
    %1401 = vmatprep.subr.bf16.mxu0 %v1156
    %1402 = vmatpush1.bf16.msra.mxu0 %v1155
    %1403 = vmatprep.subr.bf16.mxu0 %v1160
    %1404 = vmatpush1.bf16.msra.mxu0 %v1159
    %1405 = vmatprep.subr.bf16.mxu0 %v1164
    %1406 = vmatpush1.bf16.msra.mxu0 %v1163
    %1407 = vmatprep.subr.bf16.mxu0 %v1168
    %1408 = vmatpush1.bf16.msra.mxu0 %v1167
    %1409 = vmatprep.subr.bf16.mxu0 %v1172
    %1410 = vmatpush1.bf16.msra.mxu0 %v1171
    %1411 = vmatprep.subr.bf16.mxu0 %v1176
    %1412 = vmatpush1.bf16.msra.mxu0 %v1175
    %1413 = vmatprep.subr.bf16.mxu0 %v1180
    %1414 = vmatpush1.bf16.msra.mxu0 %v1179
    %1415 = vmatprep.subr.bf16.mxu0 %v1184
    %1416 = vmatpush1.bf16.msra.mxu0 %v1183
    %1417 = vmatprep.subr.bf16.mxu0 %v1188
    %1418 = vmatpush1.bf16.msra.mxu0 %v1187
    %1419 = vmatprep.subr.bf16.mxu0 %v1192
    %1420 = vmatpush1.bf16.msra.mxu0 %v1191
    %1421 = vmatprep.subr.bf16.mxu0 %v1196
    %1422 = vmatpush1.bf16.msra.mxu0 %v1195
    %1423 = vmatprep.mubr.bf16.mxu0 %v598
    %1424 = vmatmul.mubr.bf16.gmra.mrb[0].mxu0 %v597
    %v1425 = vpop.f32.mrb[0].mxu0
    %v1426 = vadd.f32 %v734, %v1425
    %v1427 = vpop.f32.mrb[0].mxu0
    %v1428 = vadd.f32 %v738, %v1427
    %v1429 = vpop.f32.mrb[0].mxu0
    %v1430 = vadd.f32 %v734, %v1429
    %v1431 = vpop.f32.mrb[0].mxu0
    %v1432 = vadd.f32 %v738, %v1431
    %1433 = vdwg.mxu0
    %1434 = vmatprep.subr.bf16.mxu0 %v1200
    %1435 = vmatpush1.bf16.msra.mxu0 %v1199
    %1436 = vmatprep.subr.bf16.mxu0 %v1204
    %1437 = vmatpush1.bf16.msra.mxu0 %v1203
    %1438 = vmatprep.subr.bf16.mxu0 %v1208
    %1439 = vmatpush1.bf16.msra.mxu0 %v1207
    %1440 = vmatprep.subr.bf16.mxu0 %v1212
    %1441 = vmatpush1.bf16.msra.mxu0 %v1211
    %1442 = vmatprep.subr.bf16.mxu0 %v1216
    %1443 = vmatpush1.bf16.msra.mxu0 %v1215
    %1444 = vmatprep.subr.bf16.mxu0 %v1220
    %1445 = vmatpush1.bf16.msra.mxu0 %v1219
    %1446 = vmatprep.subr.bf16.mxu0 %v1224
    %1447 = vmatpush1.bf16.msra.mxu0 %v1223
    %1448 = vmatprep.subr.bf16.mxu0 %v1228
    %1449 = vmatpush1.bf16.msra.mxu0 %v1227
    %1450 = vmatprep.subr.bf16.mxu0 %v1232
    %1451 = vmatpush1.bf16.msra.mxu0 %v1231
    %1452 = vmatprep.subr.bf16.mxu0 %v1236
    %1453 = vmatpush1.bf16.msra.mxu0 %v1235
    %1454 = vmatprep.subr.bf16.mxu0 %v1240
    %1455 = vmatpush1.bf16.msra.mxu0 %v1239
    %1456 = vmatprep.subr.bf16.mxu0 %v1244
    %1457 = vmatpush1.bf16.msra.mxu0 %v1243
    %1458 = vmatprep.subr.bf16.mxu0 %v1248
    %1459 = vmatpush1.bf16.msra.mxu0 %v1247
    %1460 = vmatprep.subr.bf16.mxu0 %v1252
    %1461 = vmatpush1.bf16.msra.mxu0 %v1251
    %1462 = vmatprep.subr.bf16.mxu0 %v1256
    %1463 = vmatpush1.bf16.msra.mxu0 %v1255
    %1464 = vmatprep.subr.bf16.mxu0 %v1260
    %1465 = vmatpush1.bf16.msra.mxu0 %v1259
    %1466 = vmatprep.mubr.bf16.mxu0 %v600
    %1467 = vmatmul.mubr.bf16.gmra.mrb[0].mxu0 %v599
    %v1468 = vpop.f32.mrb[0].mxu0
    %v1469 = vadd.f32 %v1426, %v1468
    %v1470 = vpop.f32.mrb[0].mxu0
    %v1471 = vadd.f32 %v1428, %v1470
    %v1472 = vpop.f32.mrb[0].mxu0
    %v1473 = vadd.f32 %v1430, %v1472
    %v1474 = vpop.f32.mrb[0].mxu0
    %v1475 = vadd.f32 %v1432, %v1474
    %1476 = vdwg.mxu0
    %1477 = vmatprep.subr.bf16.mxu0 %v1138
    %1478 = vmatpush1.bf16.msra.mxu0 %v1137
    %1479 = vmatprep.subr.bf16.mxu0 %v1142
    %1480 = vmatpush1.bf16.msra.mxu0 %v1141
    %1481 = vmatprep.subr.bf16.mxu0 %v1146
    %1482 = vmatpush1.bf16.msra.mxu0 %v1145
    %1483 = vmatprep.subr.bf16.mxu0 %v1150
    %1484 = vmatpush1.bf16.msra.mxu0 %v1149
    %1485 = vmatprep.subr.bf16.mxu0 %v1154
    %1486 = vmatpush1.bf16.msra.mxu0 %v1153
    %1487 = vmatprep.subr.bf16.mxu0 %v1158
    %1488 = vmatpush1.bf16.msra.mxu0 %v1157
    %1489 = vmatprep.subr.bf16.mxu0 %v1162
    %1490 = vmatpush1.bf16.msra.mxu0 %v1161
    %1491 = vmatprep.subr.bf16.mxu0 %v1166
    %1492 = vmatpush1.bf16.msra.mxu0 %v1165
    %1493 = vmatprep.subr.bf16.mxu0 %v1170
    %1494 = vmatpush1.bf16.msra.mxu0 %v1169
    %1495 = vmatprep.subr.bf16.mxu0 %v1174
    %1496 = vmatpush1.bf16.msra.mxu0 %v1173
    %1497 = vmatprep.subr.bf16.mxu0 %v1178
    %1498 = vmatpush1.bf16.msra.mxu0 %v1177
    %1499 = vmatprep.subr.bf16.mxu0 %v1182
    %1500 = vmatpush1.bf16.msra.mxu0 %v1181
    %1501 = vmatprep.subr.bf16.mxu0 %v1186
    %1502 = vmatpush1.bf16.msra.mxu0 %v1185
    %1503 = vmatprep.subr.bf16.mxu0 %v1190
    %1504 = vmatpush1.bf16.msra.mxu0 %v1189
    %1505 = vmatprep.subr.bf16.mxu0 %v1194
    %1506 = vmatpush1.bf16.msra.mxu0 %v1193
    %1507 = vmatprep.subr.bf16.mxu0 %v1198
    %1508 = vmatpush1.bf16.msra.mxu0 %v1197
    %1509 = vmatprep.mubr.bf16.mxu0 %v598
    %1510 = vmatmul.mubr.bf16.gmra.mrb[0].mxu0 %v597
    %v1511 = vpop.f32.mrb[0].mxu0
    %v1512 = vadd.f32 %v742, %v1511
    %v1513 = vpop.f32.mrb[0].mxu0
    %v1514 = vadd.f32 %v746, %v1513
    %v1515 = vpop.f32.mrb[0].mxu0
    %v1516 = vadd.f32 %v742, %v1515
    %v1517 = vpop.f32.mrb[0].mxu0
    %v1518 = vadd.f32 %v746, %v1517
    %1519 = vdwg.mxu0
    %1520 = vmatprep.subr.bf16.mxu0 %v1202
    %1521 = vmatpush1.bf16.msra.mxu0 %v1201
    %1522 = vmatprep.subr.bf16.mxu0 %v1206
    %1523 = vmatpush1.bf16.msra.mxu0 %v1205
    %1524 = vmatprep.subr.bf16.mxu0 %v1210
    %1525 = vmatpush1.bf16.msra.mxu0 %v1209
    %1526 = vmatprep.subr.bf16.mxu0 %v1214
    %1527 = vmatpush1.bf16.msra.mxu0 %v1213
    %1528 = vmatprep.subr.bf16.mxu0 %v1218
    %1529 = vmatpush1.bf16.msra.mxu0 %v1217
    %1530 = vmatprep.subr.bf16.mxu0 %v1222
    %1531 = vmatpush1.bf16.msra.mxu0 %v1221
    %1532 = vmatprep.subr.bf16.mxu0 %v1226
    %1533 = vmatpush1.bf16.msra.mxu0 %v1225
    %1534 = vmatprep.subr.bf16.mxu0 %v1230
    %1535 = vmatpush1.bf16.msra.mxu0 %v1229
    %1536 = vmatprep.subr.bf16.mxu0 %v1234
    %1537 = vmatpush1.bf16.msra.mxu0 %v1233
    %1538 = vmatprep.subr.bf16.mxu0 %v1238
    %1539 = vmatpush1.bf16.msra.mxu0 %v1237
    %1540 = vmatprep.subr.bf16.mxu0 %v1242
    %1541 = vmatpush1.bf16.msra.mxu0 %v1241
    %1542 = vmatprep.subr.bf16.mxu0 %v1246
    %1543 = vmatpush1.bf16.msra.mxu0 %v1245
    %1544 = vmatprep.subr.bf16.mxu0 %v1250
    %1545 = vmatpush1.bf16.msra.mxu0 %v1249
    %1546 = vmatprep.subr.bf16.mxu0 %v1254
    %1547 = vmatpush1.bf16.msra.mxu0 %v1253
    %1548 = vmatprep.subr.bf16.mxu0 %v1258
    %1549 = vmatpush1.bf16.msra.mxu0 %v1257
    %1550 = vmatprep.subr.bf16.mxu0 %v1262
    %1551 = vmatpush1.bf16.msra.mxu0 %v1261
    %1552 = vmatprep.mubr.bf16.mxu0 %v600
    %1553 = vmatmul.mubr.bf16.gmra.mrb[0].mxu0 %v599
    %v1554 = vpop.f32.mrb[0].mxu0
    %v1555 = vadd.f32 %v1512, %v1554
    %v1556 = vpop.f32.mrb[0].mxu0
    %v1557 = vadd.f32 %v1514, %v1556
    %v1558 = vpop.f32.mrb[0].mxu0
    %v1559 = vadd.f32 %v1516, %v1558
    %v1560 = vpop.f32.mrb[0].mxu0
    %v1561 = vadd.f32 %v1518, %v1560
    %1562 = vdwg.mxu0
    %vm1563 = vcmp.gt.f32.partialorder %v1469, 0.0
    %vm1564 = vcmp.gt.f32.partialorder %v1471, 0.0
    %vm1565 = vcmp.gt.f32.partialorder %v1555, 0.0
    %vm1566 = vcmp.gt.f32.partialorder %v1557, 0.0
    %vm1567 = vcmp.gt.f32.partialorder %v1473, 0.0
    %vm1568 = vcmp.gt.f32.partialorder %v1475, 0.0
    %vm1569 = vcmp.gt.f32.partialorder %v1559, 0.0
    %vm1570 = vcmp.gt.f32.partialorder %v1561, 0.0
    %v1571 = vmul.f32 %v1469, 0.2
    %v1572 = vmul.f32 %v1471, 0.2
    %v1573 = vmul.f32 %v1555, 0.2
    %v1574 = vmul.f32 %v1557, 0.2
    %v1575 = vmul.f32 %v1473, 0.2
    %v1576 = vmul.f32 %v1475, 0.2
    %v1577 = vmul.f32 %v1559, 0.2
    %v1578 = vmul.f32 %v1561, 0.2
    %v1579 = vsel %vm1563, %v1469, %v1571
    %v1580 = vsel %vm1564, %v1471, %v1572
    %v1581 = vsel %vm1565, %v1555, %v1573
    %v1582 = vsel %vm1566, %v1557, %v1574
    %v1583 = vsel %vm1567, %v1473, %v1575
    %v1584 = vsel %vm1568, %v1475, %v1576
    %v1585 = vsel %vm1569, %v1559, %v1577
    %v1586 = vsel %vm1570, %v1561, %v1578
    %v1587 = vpack.c.bf16 %v1583, %v1579
    %v1588 = vpack.c.bf16 %v1584, %v1580
    %v1589 = vpack.c.bf16 %v1585, %v1581
    %v1590 = vpack.c.bf16 %v1586, %v1582
    %v1591 = vld [vmem:[#allocation7] sm:$0xff]
    %v1592 = vld [vmem:[#allocation7 + $0x8] sm:$0xff]
    %v1593 = vld [vmem:[#allocation7 + $0x10] sm:$0xff]
    %v1594 = vld [vmem:[#allocation7 + $0x18] sm:$0xf]
    %v1595 = vld [vmem:[#allocation7 + $0x1c] sm:$0xff]
    %v1596 = vld [vmem:[#allocation7 + $0x24] sm:$0xff]
    %v1597 = vld [vmem:[#allocation7 + $0x2c] sm:$0xff]
    %v1598 = vld [vmem:[#allocation7 + $0x34] sm:$0xf]
    %v1599 = vld [vmem:[#allocation7 + $0x38] sm:$0xff]
    %v1600 = vld [vmem:[#allocation7 + $0x40] sm:$0xff]
    %v1601 = vld [vmem:[#allocation7 + $0x48] sm:$0xff]
    %v1602 = vld [vmem:[#allocation7 + $0x50] sm:$0xf]
    %v1603 = vld [vmem:[#allocation7 + $0x54] sm:$0xff]
    %v1604 = vld [vmem:[#allocation7 + $0x5c] sm:$0xff]
    %v1605 = vld [vmem:[#allocation7 + $0x64] sm:$0xff]
    %v1606 = vld [vmem:[#allocation7 + $0x6c] sm:$0xf]
    %v1607 = vld [vmem:[#allocation7 + $0x70] sm:$0xff]
    %v1608 = vld [vmem:[#allocation7 + $0x78] sm:$0xff]
    %v1609 = vld [vmem:[#allocation7 + $0x80] sm:$0xff]
    %v1610 = vld [vmem:[#allocation7 + $0x88] sm:$0xf]
    %v1611 = vld [vmem:[#allocation7 + $0x8c] sm:$0xff]
    %v1612 = vld [vmem:[#allocation7 + $0x94] sm:$0xff]
    %v1613 = vld [vmem:[#allocation7 + $0x9c] sm:$0xff]
    %v1614 = vld [vmem:[#allocation7 + $0xa4] sm:$0xf]
    %v1615 = vld [vmem:[#allocation7 + $0xa8] sm:$0xff]
    %v1616 = vld [vmem:[#allocation7 + $0xb0] sm:$0xff]
    %v1617 = vld [vmem:[#allocation7 + $0xb8] sm:$0xff]
    %v1618 = vld [vmem:[#allocation7 + $0xc0] sm:$0xf]
    %v1619 = vld [vmem:[#allocation7 + $0xc4] sm:$0xff]
    %v1620 = vld [vmem:[#allocation7 + $0xcc] sm:$0xff]
    %v1621 = vld [vmem:[#allocation7 + $0xd4] sm:$0xff]
    %v1622 = vld [vmem:[#allocation7 + $0xdc] sm:$0xf]
    %v1623 = vld [vmem:[#allocation7 + $0xe0] sm:$0xff]
    %v1624 = vld [vmem:[#allocation7 + $0xe8] sm:$0xff]
    %v1625 = vld [vmem:[#allocation7 + $0xf0] sm:$0xff]
    %v1626 = vld [vmem:[#allocation7 + $0xf8] sm:$0xf]
    %v1627 = vld [vmem:[#allocation7 + $0xfc] sm:$0xff]
    %v1628 = vld [vmem:[#allocation7 + $0x104] sm:$0xff]
    %v1629 = vld [vmem:[#allocation7 + $0x10c] sm:$0xff]
    %v1630 = vld [vmem:[#allocation7 + $0x114] sm:$0xf]
    %v1631 = vld [vmem:[#allocation7 + $0x118] sm:$0xff]
    %v1632 = vld [vmem:[#allocation7 + $0x120] sm:$0xff]
    %v1633 = vld [vmem:[#allocation7 + $0x128] sm:$0xff]
    %v1634 = vld [vmem:[#allocation7 + $0x130] sm:$0xf]
    %v1635 = vld [vmem:[#allocation7 + $0x134] sm:$0xff]
    %v1636 = vld [vmem:[#allocation7 + $0x13c] sm:$0xff]
    %v1637 = vld [vmem:[#allocation7 + $0x144] sm:$0xff]
    %v1638 = vld [vmem:[#allocation7 + $0x14c] sm:$0xf]
    %v1639 = vld [vmem:[#allocation7 + $0x150] sm:$0xff]
    %v1640 = vld [vmem:[#allocation7 + $0x158] sm:$0xff]
    %v1641 = vld [vmem:[#allocation7 + $0x160] sm:$0xff]
    %v1642 = vld [vmem:[#allocation7 + $0x168] sm:$0xf]
    %v1643 = vld [vmem:[#allocation7 + $0x16c] sm:$0xff]
    %v1644 = vld [vmem:[#allocation7 + $0x174] sm:$0xff]
    %v1645 = vld [vmem:[#allocation7 + $0x17c] sm:$0xff]
    %v1646 = vld [vmem:[#allocation7 + $0x184] sm:$0xf]
    %v1647 = vld [vmem:[#allocation7 + $0x188] sm:$0xff]
    %v1648 = vld [vmem:[#allocation7 + $0x190] sm:$0xff]
    %v1649 = vld [vmem:[#allocation7 + $0x198] sm:$0xff]
    %v1650 = vld [vmem:[#allocation7 + $0x1a0] sm:$0xf]
    %v1651 = vld [vmem:[#allocation7 + $0x1a4] sm:$0xff]
    %v1652 = vld [vmem:[#allocation7 + $0x1ac] sm:$0xff]
    %v1653 = vld [vmem:[#allocation7 + $0x1b4] sm:$0xff]
    %v1654 = vld [vmem:[#allocation7 + $0x1bc] sm:$0xf]
    %v1655 = vld [vmem:[#allocation7 + $0x1c0] sm:$0xff]
    %v1656 = vld [vmem:[#allocation7 + $0x1c8] sm:$0xff]
    %v1657 = vld [vmem:[#allocation7 + $0x1d0] sm:$0xff]
    %v1658 = vld [vmem:[#allocation7 + $0x1d8] sm:$0xf]
    %v1659 = vld [vmem:[#allocation7 + $0x1dc] sm:$0xff]
    %v1660 = vld [vmem:[#allocation7 + $0x1e4] sm:$0xff]
    %v1661 = vld [vmem:[#allocation7 + $0x1ec] sm:$0xff]
    %v1662 = vld [vmem:[#allocation7 + $0x1f4] sm:$0xf]
    %v1663 = vld [vmem:[#allocation7 + $0x1f8] sm:$0xff]
    %v1664 = vld [vmem:[#allocation7 + $0x200] sm:$0xff]
    %v1665 = vld [vmem:[#allocation7 + $0x208] sm:$0xff]
    %v1666 = vld [vmem:[#allocation7 + $0x210] sm:$0xf]
    %v1667 = vld [vmem:[#allocation7 + $0x214] sm:$0xff]
    %v1668 = vld [vmem:[#allocation7 + $0x21c] sm:$0xff]
    %v1669 = vld [vmem:[#allocation7 + $0x224] sm:$0xff]
    %v1670 = vld [vmem:[#allocation7 + $0x22c] sm:$0xf]
    %v1671 = vld [vmem:[#allocation7 + $0x230] sm:$0xff]
    %v1672 = vld [vmem:[#allocation7 + $0x238] sm:$0xff]
    %v1673 = vld [vmem:[#allocation7 + $0x240] sm:$0xff]
    %v1674 = vld [vmem:[#allocation7 + $0x248] sm:$0xf]
    %v1675 = vld [vmem:[#allocation7 + $0x24c] sm:$0xff]
    %v1676 = vld [vmem:[#allocation7 + $0x254] sm:$0xff]
    %v1677 = vld [vmem:[#allocation7 + $0x25c] sm:$0xff]
    %v1678 = vld [vmem:[#allocation7 + $0x264] sm:$0xf]
    %v1679 = vld [vmem:[#allocation7 + $0x268] sm:$0xff]
    %v1680 = vld [vmem:[#allocation7 + $0x270] sm:$0xff]
    %v1681 = vld [vmem:[#allocation7 + $0x278] sm:$0xff]
    %v1682 = vld [vmem:[#allocation7 + $0x280] sm:$0xf]
    %v1683 = vld [vmem:[#allocation7 + $0x284] sm:$0xff]
    %v1684 = vld [vmem:[#allocation7 + $0x28c] sm:$0xff]
    %v1685 = vld [vmem:[#allocation7 + $0x294] sm:$0xff]
    %v1686 = vld [vmem:[#allocation7 + $0x29c] sm:$0xf]
    %v1687 = vld [vmem:[#allocation7 + $0x2a0] sm:$0xff]
    %v1688 = vld [vmem:[#allocation7 + $0x2a8] sm:$0xff]
    %v1689 = vld [vmem:[#allocation7 + $0x2b0] sm:$0xff]
    %v1690 = vld [vmem:[#allocation7 + $0x2b8] sm:$0xf]
    %v1691 = vld [vmem:[#allocation7 + $0x2bc] sm:$0xff]
    %v1692 = vld [vmem:[#allocation7 + $0x2c4] sm:$0xff]
    %v1693 = vld [vmem:[#allocation7 + $0x2cc] sm:$0xff]
    %v1694 = vld [vmem:[#allocation7 + $0x2d4] sm:$0xf]
    %v1695 = vld [vmem:[#allocation7 + $0x2d8] sm:$0xff]
    %v1696 = vld [vmem:[#allocation7 + $0x2e0] sm:$0xff]
    %v1697 = vld [vmem:[#allocation7 + $0x2e8] sm:$0xff]
    %v1698 = vld [vmem:[#allocation7 + $0x2f0] sm:$0xf]
    %v1699 = vld [vmem:[#allocation7 + $0x2f4] sm:$0xff]
    %v1700 = vld [vmem:[#allocation7 + $0x2fc] sm:$0xff]
    %v1701 = vld [vmem:[#allocation7 + $0x304] sm:$0xff]
    %v1702 = vld [vmem:[#allocation7 + $0x30c] sm:$0xf]
    %v1703 = vld [vmem:[#allocation7 + $0x310] sm:$0xff]
    %v1704 = vld [vmem:[#allocation7 + $0x318] sm:$0xff]
    %v1705 = vld [vmem:[#allocation7 + $0x320] sm:$0xff]
    %v1706 = vld [vmem:[#allocation7 + $0x328] sm:$0xf]
    %v1707 = vld [vmem:[#allocation7 + $0x32c] sm:$0xff]
    %v1708 = vld [vmem:[#allocation7 + $0x334] sm:$0xff]
    %v1709 = vld [vmem:[#allocation7 + $0x33c] sm:$0xff]
    %v1710 = vld [vmem:[#allocation7 + $0x344] sm:$0xf]
    %v1711 = vld [vmem:[#allocation7 + $0x348] sm:$0xff]
    %v1712 = vld [vmem:[#allocation7 + $0x350] sm:$0xff]
    %v1713 = vld [vmem:[#allocation7 + $0x358] sm:$0xff]
    %v1714 = vld [vmem:[#allocation7 + $0x360] sm:$0xf]
    %v1715 = vld [vmem:[#allocation7 + $0x364] sm:$0xff]
    %v1716 = vld [vmem:[#allocation7 + $0x36c] sm:$0xff]
    %v1717 = vld [vmem:[#allocation7 + $0x374] sm:$0xff]
    %v1718 = vld [vmem:[#allocation7 + $0x37c] sm:$0xf]
    %v1719 = vld [vmem:[#allocation7 + $0x380] sm:$0xff]
    %v1720 = vld [vmem:[#allocation7 + $0x388] sm:$0xff]
    %v1721 = vld [vmem:[#allocation7 + $0x390] sm:$0xff]
    %v1722 = vld [vmem:[#allocation7 + $0x398] sm:$0xf]
    %v1723 = vld [vmem:[#allocation7 + $0x39c] sm:$0xff]
    %v1724 = vld [vmem:[#allocation7 + $0x3a4] sm:$0xff]
    %v1725 = vld [vmem:[#allocation7 + $0x3ac] sm:$0xff]
    %v1726 = vld [vmem:[#allocation7 + $0x3b4] sm:$0xf]
    %v1727 = vld [vmem:[#allocation7 + $0x3b8] sm:$0xff]
    %v1728 = vld [vmem:[#allocation7 + $0x3c0] sm:$0xff]
    %v1729 = vld [vmem:[#allocation7 + $0x3c8] sm:$0xff]
    %v1730 = vld [vmem:[#allocation7 + $0x3d0] sm:$0xf]
    %v1731 = vld [vmem:[#allocation7 + $0x3d4] sm:$0xff]
    %v1732 = vld [vmem:[#allocation7 + $0x3dc] sm:$0xff]
    %v1733 = vld [vmem:[#allocation7 + $0x3e4] sm:$0xff]
    %v1734 = vld [vmem:[#allocation7 + $0x3ec] sm:$0xf]
    %v1735 = vld [vmem:[#allocation7 + $0x3f0] sm:$0xff]
    %v1736 = vld [vmem:[#allocation7 + $0x3f8] sm:$0xff]
    %v1737 = vld [vmem:[#allocation7 + $0x400] sm:$0xff]
    %v1738 = vld [vmem:[#allocation7 + $0x408] sm:$0xf]
    %v1739 = vld [vmem:[#allocation7 + $0x40c] sm:$0xff]
    %v1740 = vld [vmem:[#allocation7 + $0x414] sm:$0xff]
    %v1741 = vld [vmem:[#allocation7 + $0x41c] sm:$0xff]
    %v1742 = vld [vmem:[#allocation7 + $0x424] sm:$0xf]
    %v1743 = vld [vmem:[#allocation7 + $0x428] sm:$0xff]
    %v1744 = vld [vmem:[#allocation7 + $0x430] sm:$0xff]
    %v1745 = vld [vmem:[#allocation7 + $0x438] sm:$0xff]
    %v1746 = vld [vmem:[#allocation7 + $0x440] sm:$0xf]
    %v1747 = vld [vmem:[#allocation7 + $0x444] sm:$0xff]
    %v1748 = vld [vmem:[#allocation7 + $0x44c] sm:$0xff]
    %v1749 = vld [vmem:[#allocation7 + $0x454] sm:$0xff]
    %v1750 = vld [vmem:[#allocation7 + $0x45c] sm:$0xf]
    %v1751 = vld [vmem:[#allocation7 + $0x460] sm:$0xff]
    %v1752 = vld [vmem:[#allocation7 + $0x468] sm:$0xff]
    %v1753 = vld [vmem:[#allocation7 + $0x470] sm:$0xff]
    %v1754 = vld [vmem:[#allocation7 + $0x478] sm:$0xf]
    %v1755 = vld [vmem:[#allocation7 + $0x47c] sm:$0xff]
    %v1756 = vld [vmem:[#allocation7 + $0x484] sm:$0xff]
    %v1757 = vld [vmem:[#allocation7 + $0x48c] sm:$0xff]
    %v1758 = vld [vmem:[#allocation7 + $0x494] sm:$0xf]
    %v1759 = vld [vmem:[#allocation7 + $0x498] sm:$0xff]
    %v1760 = vld [vmem:[#allocation7 + $0x4a0] sm:$0xff]
    %v1761 = vld [vmem:[#allocation7 + $0x4a8] sm:$0xff]
    %v1762 = vld [vmem:[#allocation7 + $0x4b0] sm:$0xf]
    %v1763 = vld [vmem:[#allocation7 + $0x4b4] sm:$0xff]
    %v1764 = vld [vmem:[#allocation7 + $0x4bc] sm:$0xff]
    %v1765 = vld [vmem:[#allocation7 + $0x4c4] sm:$0xff]
    %v1766 = vld [vmem:[#allocation7 + $0x4cc] sm:$0xf]
    %v1767 = vld [vmem:[#allocation7 + $0x4d0] sm:$0xff]
    %v1768 = vld [vmem:[#allocation7 + $0x4d8] sm:$0xff]
    %v1769 = vld [vmem:[#allocation7 + $0x4e0] sm:$0xff]
    %v1770 = vld [vmem:[#allocation7 + $0x4e8] sm:$0xf]
    %v1771 = vld [vmem:[#allocation7 + $0x4ec] sm:$0xff]
    %v1772 = vld [vmem:[#allocation7 + $0x4f4] sm:$0xff]
    %v1773 = vld [vmem:[#allocation7 + $0x4fc] sm:$0xff]
    %v1774 = vld [vmem:[#allocation7 + $0x504] sm:$0xf]
    %v1775 = vld [vmem:[#allocation7 + $0x508] sm:$0xff]
    %v1776 = vld [vmem:[#allocation7 + $0x510] sm:$0xff]
    %v1777 = vld [vmem:[#allocation7 + $0x518] sm:$0xff]
    %v1778 = vld [vmem:[#allocation7 + $0x520] sm:$0xf]
    %v1779 = vld [vmem:[#allocation7 + $0x524] sm:$0xff]
    %v1780 = vld [vmem:[#allocation7 + $0x52c] sm:$0xff]
    %v1781 = vld [vmem:[#allocation7 + $0x534] sm:$0xff]
    %v1782 = vld [vmem:[#allocation7 + $0x53c] sm:$0xf]
    %v1783 = vld [vmem:[#allocation7 + $0x540] sm:$0xff]
    %v1784 = vld [vmem:[#allocation7 + $0x548] sm:$0xff]
    %v1785 = vld [vmem:[#allocation7 + $0x550] sm:$0xff]
    %v1786 = vld [vmem:[#allocation7 + $0x558] sm:$0xf]
    %v1787 = vld [vmem:[#allocation7 + $0x55c] sm:$0xff]
    %v1788 = vld [vmem:[#allocation7 + $0x564] sm:$0xff]
    %v1789 = vld [vmem:[#allocation7 + $0x56c] sm:$0xff]
    %v1790 = vld [vmem:[#allocation7 + $0x574] sm:$0xf]
    %v1791 = vld [vmem:[#allocation7 + $0x578] sm:$0xff]
    %v1792 = vld [vmem:[#allocation7 + $0x580] sm:$0xff]
    %v1793 = vld [vmem:[#allocation7 + $0x588] sm:$0xff]
    %v1794 = vld [vmem:[#allocation7 + $0x590] sm:$0xf]
    %v1795 = vld [vmem:[#allocation7 + $0x594] sm:$0xff]
    %v1796 = vld [vmem:[#allocation7 + $0x59c] sm:$0xff]
    %v1797 = vld [vmem:[#allocation7 + $0x5a4] sm:$0xff]
    %v1798 = vld [vmem:[#allocation7 + $0x5ac] sm:$0xf]
    %v1799 = vld [vmem:[#allocation7 + $0x5b0] sm:$0xff]
    %v1800 = vld [vmem:[#allocation7 + $0x5b8] sm:$0xff]
    %v1801 = vld [vmem:[#allocation7 + $0x5c0] sm:$0xff]
    %v1802 = vld [vmem:[#allocation7 + $0x5c8] sm:$0xf]
    %v1803 = vld [vmem:[#allocation7 + $0x5cc] sm:$0xff]
    %v1804 = vld [vmem:[#allocation7 + $0x5d4] sm:$0xff]
    %v1805 = vld [vmem:[#allocation7 + $0x5dc] sm:$0xff]
    %v1806 = vld [vmem:[#allocation7 + $0x5e4] sm:$0xf]
    %v1807 = vld [vmem:[#allocation7 + $0x5e8] sm:$0xff]
    %v1808 = vld [vmem:[#allocation7 + $0x5f0] sm:$0xff]
    %v1809 = vld [vmem:[#allocation7 + $0x5f8] sm:$0xff]
    %v1810 = vld [vmem:[#allocation7 + $0x600] sm:$0xf]
    %v1811 = vld [vmem:[#allocation7 + $0x604] sm:$0xff]
    %v1812 = vld [vmem:[#allocation7 + $0x60c] sm:$0xff]
    %v1813 = vld [vmem:[#allocation7 + $0x614] sm:$0xff]
    %v1814 = vld [vmem:[#allocation7 + $0x61c] sm:$0xf]
    %v1815 = vld [vmem:[#allocation7 + $0x620] sm:$0xff]
    %v1816 = vld [vmem:[#allocation7 + $0x628] sm:$0xff]
    %v1817 = vld [vmem:[#allocation7 + $0x630] sm:$0xff]
    %v1818 = vld [vmem:[#allocation7 + $0x638] sm:$0xf]
    %v1819 = vld [vmem:[#allocation7 + $0x63c] sm:$0xff]
    %v1820 = vld [vmem:[#allocation7 + $0x644] sm:$0xff]
    %v1821 = vld [vmem:[#allocation7 + $0x64c] sm:$0xff]
    %v1822 = vld [vmem:[#allocation7 + $0x654] sm:$0xf]
    %v1823 = vld [vmem:[#allocation7 + $0x658] sm:$0xff]
    %v1824 = vld [vmem:[#allocation7 + $0x660] sm:$0xff]
    %v1825 = vld [vmem:[#allocation7 + $0x668] sm:$0xff]
    %v1826 = vld [vmem:[#allocation7 + $0x670] sm:$0xf]
    %v1827 = vld [vmem:[#allocation7 + $0x674] sm:$0xff]
    %v1828 = vld [vmem:[#allocation7 + $0x67c] sm:$0xff]
    %v1829 = vld [vmem:[#allocation7 + $0x684] sm:$0xff]
    %v1830 = vld [vmem:[#allocation7 + $0x68c] sm:$0xf]
    %v1831 = vld [vmem:[#allocation7 + $0x690] sm:$0xff]
    %v1832 = vld [vmem:[#allocation7 + $0x698] sm:$0xff]
    %v1833 = vld [vmem:[#allocation7 + $0x6a0] sm:$0xff]
    %v1834 = vld [vmem:[#allocation7 + $0x6a8] sm:$0xf]
    %v1835 = vld [vmem:[#allocation7 + $0x6ac] sm:$0xff]
    %v1836 = vld [vmem:[#allocation7 + $0x6b4] sm:$0xff]
    %v1837 = vld [vmem:[#allocation7 + $0x6bc] sm:$0xff]
    %v1838 = vld [vmem:[#allocation7 + $0x6c4] sm:$0xf]
    %v1839 = vld [vmem:[#allocation7 + $0x6c8] sm:$0xff]
    %v1840 = vld [vmem:[#allocation7 + $0x6d0] sm:$0xff]
    %v1841 = vld [vmem:[#allocation7 + $0x6d8] sm:$0xff]
    %v1842 = vld [vmem:[#allocation7 + $0x6e0] sm:$0xf]
    %v1843 = vld [vmem:[#allocation7 + $0x6e4] sm:$0xff]
    %v1844 = vld [vmem:[#allocation7 + $0x6ec] sm:$0xff]
    %v1845 = vld [vmem:[#allocation7 + $0x6f4] sm:$0xff]
    %v1846 = vld [vmem:[#allocation7 + $0x6fc] sm:$0xf]
    %v1847 = vld [vmem:[%s6] sm:$0xff]
    %v1849 = vlaneseq
    %v1850 = vshrl.u32 %v1849, 7
    %v1851 = vsub.s32 0, %v1850
    %v1852 = vrot.slane %v1847, %v1851
    %v1853 = vlaneseq
    %v1854 = vshrl.u32 %v1853, 7
    %v1855 = vsub.s32 1, %v1854
    %v1856 = vrot.slane %v1847, %v1855
    %v1857 = vlaneseq
    %v1858 = vshrl.u32 %v1857, 7
    %v1859 = vsub.s32 2, %v1858
    %v1860 = vrot.slane %v1847, %v1859
    %v1861 = vlaneseq
    %v1862 = vshrl.u32 %v1861, 7
    %v1863 = vsub.s32 3, %v1862
    %v1864 = vrot.slane %v1847, %v1863
    %v1865 = vlaneseq
    %v1866 = vshrl.u32 %v1865, 7
    %v1867 = vsub.s32 4, %v1866
    %v1868 = vrot.slane %v1847, %v1867
    %v1869 = vlaneseq
    %v1870 = vshrl.u32 %v1869, 7
    %v1871 = vsub.s32 5, %v1870
    %v1872 = vrot.slane %v1847, %v1871
    %v1873 = vlaneseq
    %v1874 = vshrl.u32 %v1873, 7
    %v1875 = vsub.s32 6, %v1874
    %v1876 = vrot.slane %v1847, %v1875
    %v2140 = vunpack.c.l.b16 %v1591
    %v2141 = vunpack.c.h.b16 %v1591
    %v2142 = vunpack.c.l.b16 %v1592
    %v2143 = vunpack.c.h.b16 %v1592
    %v2144 = vunpack.c.l.b16 %v1593
    %v2145 = vunpack.c.h.b16 %v1593
    %v2146 = vunpack.c.l.b16 %v1594
    %v2147 = vunpack.c.l.b16 %v1595
    %v2148 = vunpack.c.h.b16 %v1595
    %v2149 = vunpack.c.l.b16 %v1596
    %v2150 = vunpack.c.h.b16 %v1596
    %v2151 = vunpack.c.l.b16 %v1597
    %v2152 = vunpack.c.h.b16 %v1597
    %v2153 = vunpack.c.l.b16 %v1598
    %v2154 = vunpack.c.l.b16 %v1599
    %v2155 = vunpack.c.h.b16 %v1599
    %v2156 = vunpack.c.l.b16 %v1600
    %v2157 = vunpack.c.h.b16 %v1600
    %v2158 = vunpack.c.l.b16 %v1601
    %v2159 = vunpack.c.h.b16 %v1601
    %v2160 = vunpack.c.l.b16 %v1602
    %v2161 = vunpack.c.l.b16 %v1603
    %v2162 = vunpack.c.h.b16 %v1603
    %v2163 = vunpack.c.l.b16 %v1604
    %v2164 = vunpack.c.h.b16 %v1604
    %v2165 = vunpack.c.l.b16 %v1605
    %v2166 = vunpack.c.h.b16 %v1605
    %v2167 = vunpack.c.l.b16 %v1606
    %v2168 = vunpack.c.l.b16 %v1607
    %v2169 = vunpack.c.h.b16 %v1607
    %v2170 = vunpack.c.l.b16 %v1608
    %v2171 = vunpack.c.h.b16 %v1608
    %v2172 = vunpack.c.l.b16 %v1609
    %v2173 = vunpack.c.h.b16 %v1609
    %v2174 = vunpack.c.l.b16 %v1610
    %v2175 = vunpack.c.l.b16 %v1611
    %v2176 = vunpack.c.h.b16 %v1611
    %v2177 = vunpack.c.l.b16 %v1612
    %v2178 = vunpack.c.h.b16 %v1612
    %v2179 = vunpack.c.l.b16 %v1613
    %v2180 = vunpack.c.h.b16 %v1613
    %v2181 = vunpack.c.l.b16 %v1614
    %v2182 = vunpack.c.l.b16 %v1615
    %v2183 = vunpack.c.h.b16 %v1615
    %v2184 = vunpack.c.l.b16 %v1616
    %v2185 = vunpack.c.h.b16 %v1616
    %v2186 = vunpack.c.l.b16 %v1617
    %v2187 = vunpack.c.h.b16 %v1617
    %v2188 = vunpack.c.l.b16 %v1618
    %v2189 = vunpack.c.l.b16 %v1619
    %v2190 = vunpack.c.h.b16 %v1619
    %v2191 = vunpack.c.l.b16 %v1620
    %v2192 = vunpack.c.h.b16 %v1620
    %v2193 = vunpack.c.l.b16 %v1621
    %v2194 = vunpack.c.h.b16 %v1621
    %v2195 = vunpack.c.l.b16 %v1622
    %v2196 = vunpack.c.l.b16 %v1623
    %v2197 = vunpack.c.h.b16 %v1623
    %v2198 = vunpack.c.l.b16 %v1624
    %v2199 = vunpack.c.h.b16 %v1624
    %v2200 = vunpack.c.l.b16 %v1625
    %v2201 = vunpack.c.h.b16 %v1625
    %v2202 = vunpack.c.l.b16 %v1626
    %v2203 = vunpack.c.l.b16 %v1627
    %v2204 = vunpack.c.h.b16 %v1627
    %v2205 = vunpack.c.l.b16 %v1628
    %v2206 = vunpack.c.h.b16 %v1628
    %v2207 = vunpack.c.l.b16 %v1629
    %v2208 = vunpack.c.h.b16 %v1629
    %v2209 = vunpack.c.l.b16 %v1630
    %v2210 = vunpack.c.l.b16 %v1631
    %v2211 = vunpack.c.h.b16 %v1631
    %v2212 = vunpack.c.l.b16 %v1632
    %v2213 = vunpack.c.h.b16 %v1632
    %v2214 = vunpack.c.l.b16 %v1633
    %v2215 = vunpack.c.h.b16 %v1633
    %v2216 = vunpack.c.l.b16 %v1634
    %v2217 = vunpack.c.l.b16 %v1635
    %v2218 = vunpack.c.h.b16 %v1635
    %v2219 = vunpack.c.l.b16 %v1636
    %v2220 = vunpack.c.h.b16 %v1636
    %v2221 = vunpack.c.l.b16 %v1637
    %v2222 = vunpack.c.h.b16 %v1637
    %v2223 = vunpack.c.l.b16 %v1638
    %v2224 = vunpack.c.l.b16 %v1639
    %v2225 = vunpack.c.h.b16 %v1639
    %v2226 = vunpack.c.l.b16 %v1640
    %v2227 = vunpack.c.h.b16 %v1640
    %v2228 = vunpack.c.l.b16 %v1641
    %v2229 = vunpack.c.h.b16 %v1641
    %v2230 = vunpack.c.l.b16 %v1642
    %v2231 = vunpack.c.l.b16 %v1643
    %v2232 = vunpack.c.h.b16 %v1643
    %v2233 = vunpack.c.l.b16 %v1644
    %v2234 = vunpack.c.h.b16 %v1644
    %v2235 = vunpack.c.l.b16 %v1645
    %v2236 = vunpack.c.h.b16 %v1645
    %v2237 = vunpack.c.l.b16 %v1646
    %v2238 = vunpack.c.l.b16 %v1647
    %v2239 = vunpack.c.h.b16 %v1647
    %v2240 = vunpack.c.l.b16 %v1648
    %v2241 = vunpack.c.h.b16 %v1648
    %v2242 = vunpack.c.l.b16 %v1649
    %v2243 = vunpack.c.h.b16 %v1649
    %v2244 = vunpack.c.l.b16 %v1650
    %v2245 = vunpack.c.l.b16 %v1651
    %v2246 = vunpack.c.h.b16 %v1651
    %v2247 = vunpack.c.l.b16 %v1652
    %v2248 = vunpack.c.h.b16 %v1652
    %v2249 = vunpack.c.l.b16 %v1653
    %v2250 = vunpack.c.h.b16 %v1653
    %v2251 = vunpack.c.l.b16 %v1654
    %v2252 = vunpack.c.l.b16 %v1655
    %v2253 = vunpack.c.h.b16 %v1655
    %v2254 = vunpack.c.l.b16 %v1656
    %v2255 = vunpack.c.h.b16 %v1656
    %v2256 = vunpack.c.l.b16 %v1657
    %v2257 = vunpack.c.h.b16 %v1657
    %v2258 = vunpack.c.l.b16 %v1658
    %v2259 = vunpack.c.l.b16 %v1659
    %v2260 = vunpack.c.h.b16 %v1659
    %v2261 = vunpack.c.l.b16 %v1660
    %v2262 = vunpack.c.h.b16 %v1660
    %v2263 = vunpack.c.l.b16 %v1661
    %v2264 = vunpack.c.h.b16 %v1661
    %v2265 = vunpack.c.l.b16 %v1662
    %v2266 = vunpack.c.l.b16 %v1663
    %v2267 = vunpack.c.h.b16 %v1663
    %v2268 = vunpack.c.l.b16 %v1664
    %v2269 = vunpack.c.h.b16 %v1664
    %v2270 = vunpack.c.l.b16 %v1665
    %v2271 = vunpack.c.h.b16 %v1665
    %v2272 = vunpack.c.l.b16 %v1666
    %v2273 = vunpack.c.l.b16 %v1667
    %v2274 = vunpack.c.h.b16 %v1667
    %v2275 = vunpack.c.l.b16 %v1668
    %v2276 = vunpack.c.h.b16 %v1668
    %v2277 = vunpack.c.l.b16 %v1669
    %v2278 = vunpack.c.h.b16 %v1669
    %v2279 = vunpack.c.l.b16 %v1670
    %v2280 = vunpack.c.l.b16 %v1671
    %v2281 = vunpack.c.h.b16 %v1671
    %v2282 = vunpack.c.l.b16 %v1672
    %v2283 = vunpack.c.h.b16 %v1672
    %v2284 = vunpack.c.l.b16 %v1673
    %v2285 = vunpack.c.h.b16 %v1673
    %v2286 = vunpack.c.l.b16 %v1674
    %v2287 = vunpack.c.l.b16 %v1675
    %v2288 = vunpack.c.h.b16 %v1675
    %v2289 = vunpack.c.l.b16 %v1676
    %v2290 = vunpack.c.h.b16 %v1676
    %v2291 = vunpack.c.l.b16 %v1677
    %v2292 = vunpack.c.h.b16 %v1677
    %v2293 = vunpack.c.l.b16 %v1678
    %v2294 = vunpack.c.l.b16 %v1679
    %v2295 = vunpack.c.h.b16 %v1679
    %v2296 = vunpack.c.l.b16 %v1680
    %v2297 = vunpack.c.h.b16 %v1680
    %v2298 = vunpack.c.l.b16 %v1681
    %v2299 = vunpack.c.h.b16 %v1681
    %v2300 = vunpack.c.l.b16 %v1682
    %v2301 = vunpack.c.l.b16 %v1683
    %v2302 = vunpack.c.h.b16 %v1683
    %v2303 = vunpack.c.l.b16 %v1684
    %v2304 = vunpack.c.h.b16 %v1684
    %v2305 = vunpack.c.l.b16 %v1685
    %v2306 = vunpack.c.h.b16 %v1685
    %v2307 = vunpack.c.l.b16 %v1686
    %v2308 = vunpack.c.l.b16 %v1687
    %v2309 = vunpack.c.h.b16 %v1687
    %v2310 = vunpack.c.l.b16 %v1688
    %v2311 = vunpack.c.h.b16 %v1688
    %v2312 = vunpack.c.l.b16 %v1689
    %v2313 = vunpack.c.h.b16 %v1689
    %v2314 = vunpack.c.l.b16 %v1690
    %v2315 = vunpack.c.l.b16 %v1691
    %v2316 = vunpack.c.h.b16 %v1691
    %v2317 = vunpack.c.l.b16 %v1692
    %v2318 = vunpack.c.h.b16 %v1692
    %v2319 = vunpack.c.l.b16 %v1693
    %v2320 = vunpack.c.h.b16 %v1693
    %v2321 = vunpack.c.l.b16 %v1694
    %v2322 = vunpack.c.l.b16 %v1695
    %v2323 = vunpack.c.h.b16 %v1695
    %v2324 = vunpack.c.l.b16 %v1696
    %v2325 = vunpack.c.h.b16 %v1696
    %v2326 = vunpack.c.l.b16 %v1697
    %v2327 = vunpack.c.h.b16 %v1697
    %v2328 = vunpack.c.l.b16 %v1698
    %v2329 = vunpack.c.l.b16 %v1699
    %v2330 = vunpack.c.h.b16 %v1699
    %v2331 = vunpack.c.l.b16 %v1700
    %v2332 = vunpack.c.h.b16 %v1700
    %v2333 = vunpack.c.l.b16 %v1701
    %v2334 = vunpack.c.h.b16 %v1701
    %v2335 = vunpack.c.l.b16 %v1702
    %v2336 = vunpack.c.l.b16 %v1703
    %v2337 = vunpack.c.h.b16 %v1703
    %v2338 = vunpack.c.l.b16 %v1704
    %v2339 = vunpack.c.h.b16 %v1704
    %v2340 = vunpack.c.l.b16 %v1705
    %v2341 = vunpack.c.h.b16 %v1705
    %v2342 = vunpack.c.l.b16 %v1706
    %v2343 = vunpack.c.l.b16 %v1707
    %v2344 = vunpack.c.h.b16 %v1707
    %v2345 = vunpack.c.l.b16 %v1708
    %v2346 = vunpack.c.h.b16 %v1708
    %v2347 = vunpack.c.l.b16 %v1709
    %v2348 = vunpack.c.h.b16 %v1709
    %v2349 = vunpack.c.l.b16 %v1710
    %v2350 = vunpack.c.l.b16 %v1711
    %v2351 = vunpack.c.h.b16 %v1711
    %v2352 = vunpack.c.l.b16 %v1712
    %v2353 = vunpack.c.h.b16 %v1712
    %v2354 = vunpack.c.l.b16 %v1713
    %v2355 = vunpack.c.h.b16 %v1713
    %v2356 = vunpack.c.l.b16 %v1714
    %v2357 = vunpack.c.l.b16 %v1715
    %v2358 = vunpack.c.h.b16 %v1715
    %v2359 = vunpack.c.l.b16 %v1716
    %v2360 = vunpack.c.h.b16 %v1716
    %v2361 = vunpack.c.l.b16 %v1717
    %v2362 = vunpack.c.h.b16 %v1717
    %v2363 = vunpack.c.l.b16 %v1718
    %v2364 = vunpack.c.l.b16 %v1719
    %v2365 = vunpack.c.h.b16 %v1719
    %v2366 = vunpack.c.l.b16 %v1720
    %v2367 = vunpack.c.h.b16 %v1720
    %v2368 = vunpack.c.l.b16 %v1721
    %v2369 = vunpack.c.h.b16 %v1721
    %v2370 = vunpack.c.l.b16 %v1722
    %v2371 = vunpack.c.l.b16 %v1723
    %v2372 = vunpack.c.h.b16 %v1723
    %v2373 = vunpack.c.l.b16 %v1724
    %v2374 = vunpack.c.h.b16 %v1724
    %v2375 = vunpack.c.l.b16 %v1725
    %v2376 = vunpack.c.h.b16 %v1725
    %v2377 = vunpack.c.l.b16 %v1726
    %v2378 = vunpack.c.l.b16 %v1727
    %v2379 = vunpack.c.h.b16 %v1727
    %v2380 = vunpack.c.l.b16 %v1728
    %v2381 = vunpack.c.h.b16 %v1728
    %v2382 = vunpack.c.l.b16 %v1729
    %v2383 = vunpack.c.h.b16 %v1729
    %v2384 = vunpack.c.l.b16 %v1730
    %v2385 = vunpack.c.l.b16 %v1731
    %v2386 = vunpack.c.h.b16 %v1731
    %v2387 = vunpack.c.l.b16 %v1732
    %v2388 = vunpack.c.h.b16 %v1732
    %v2389 = vunpack.c.l.b16 %v1733
    %v2390 = vunpack.c.h.b16 %v1733
    %v2391 = vunpack.c.l.b16 %v1734
    %v2392 = vunpack.c.l.b16 %v1735
    %v2393 = vunpack.c.h.b16 %v1735
    %v2394 = vunpack.c.l.b16 %v1736
    %v2395 = vunpack.c.h.b16 %v1736
    %v2396 = vunpack.c.l.b16 %v1737
    %v2397 = vunpack.c.h.b16 %v1737
    %v2398 = vunpack.c.l.b16 %v1738
    %v2399 = vunpack.c.l.b16 %v1739
    %v2400 = vunpack.c.h.b16 %v1739
    %v2401 = vunpack.c.l.b16 %v1740
    %v2402 = vunpack.c.h.b16 %v1740
    %v2403 = vunpack.c.l.b16 %v1741
    %v2404 = vunpack.c.h.b16 %v1741
    %v2405 = vunpack.c.l.b16 %v1742
    %v2406 = vunpack.c.l.b16 %v1743
    %v2407 = vunpack.c.h.b16 %v1743
    %v2408 = vunpack.c.l.b16 %v1744
    %v2409 = vunpack.c.h.b16 %v1744
    %v2410 = vunpack.c.l.b16 %v1745
    %v2411 = vunpack.c.h.b16 %v1745
    %v2412 = vunpack.c.l.b16 %v1746
    %v2413 = vunpack.c.l.b16 %v1747
    %v2414 = vunpack.c.h.b16 %v1747
    %v2415 = vunpack.c.l.b16 %v1748
    %v2416 = vunpack.c.h.b16 %v1748
    %v2417 = vunpack.c.l.b16 %v1749
    %v2418 = vunpack.c.h.b16 %v1749
    %v2419 = vunpack.c.l.b16 %v1750
    %v2420 = vunpack.c.l.b16 %v1751
    %v2421 = vunpack.c.h.b16 %v1751
    %v2422 = vunpack.c.l.b16 %v1752
    %v2423 = vunpack.c.h.b16 %v1752
    %v2424 = vunpack.c.l.b16 %v1753
    %v2425 = vunpack.c.h.b16 %v1753
    %v2426 = vunpack.c.l.b16 %v1754
    %v2427 = vunpack.c.l.b16 %v1755
    %v2428 = vunpack.c.h.b16 %v1755
    %v2429 = vunpack.c.l.b16 %v1756
    %v2430 = vunpack.c.h.b16 %v1756
    %v2431 = vunpack.c.l.b16 %v1757
    %v2432 = vunpack.c.h.b16 %v1757
    %v2433 = vunpack.c.l.b16 %v1758
    %v2434 = vunpack.c.l.b16 %v1759
    %v2435 = vunpack.c.h.b16 %v1759
    %v2436 = vunpack.c.l.b16 %v1760
    %v2437 = vunpack.c.h.b16 %v1760
    %v2438 = vunpack.c.l.b16 %v1761
    %v2439 = vunpack.c.h.b16 %v1761
    %v2440 = vunpack.c.l.b16 %v1762
    %v2441 = vunpack.c.l.b16 %v1763
    %v2442 = vunpack.c.h.b16 %v1763
    %v2443 = vunpack.c.l.b16 %v1764
    %v2444 = vunpack.c.h.b16 %v1764
    %v2445 = vunpack.c.l.b16 %v1765
    %v2446 = vunpack.c.h.b16 %v1765
    %v2447 = vunpack.c.l.b16 %v1766
    %v2448 = vunpack.c.l.b16 %v1767
    %v2449 = vunpack.c.h.b16 %v1767
    %v2450 = vunpack.c.l.b16 %v1768
    %v2451 = vunpack.c.h.b16 %v1768
    %v2452 = vunpack.c.l.b16 %v1769
    %v2453 = vunpack.c.h.b16 %v1769
    %v2454 = vunpack.c.l.b16 %v1770
    %v2455 = vunpack.c.l.b16 %v1771
    %v2456 = vunpack.c.h.b16 %v1771
    %v2457 = vunpack.c.l.b16 %v1772
    %v2458 = vunpack.c.h.b16 %v1772
    %v2459 = vunpack.c.l.b16 %v1773
    %v2460 = vunpack.c.h.b16 %v1773
    %v2461 = vunpack.c.l.b16 %v1774
    %v2462 = vunpack.c.l.b16 %v1775
    %v2463 = vunpack.c.h.b16 %v1775
    %v2464 = vunpack.c.l.b16 %v1776
    %v2465 = vunpack.c.h.b16 %v1776
    %v2466 = vunpack.c.l.b16 %v1777
    %v2467 = vunpack.c.h.b16 %v1777
    %v2468 = vunpack.c.l.b16 %v1778
    %v2469 = vunpack.c.l.b16 %v1779
    %v2470 = vunpack.c.h.b16 %v1779
    %v2471 = vunpack.c.l.b16 %v1780
    %v2472 = vunpack.c.h.b16 %v1780
    %v2473 = vunpack.c.l.b16 %v1781
    %v2474 = vunpack.c.h.b16 %v1781
    %v2475 = vunpack.c.l.b16 %v1782
    %v2476 = vunpack.c.l.b16 %v1783
    %v2477 = vunpack.c.h.b16 %v1783
    %v2478 = vunpack.c.l.b16 %v1784
    %v2479 = vunpack.c.h.b16 %v1784
    %v2480 = vunpack.c.l.b16 %v1785
    %v2481 = vunpack.c.h.b16 %v1785
    %v2482 = vunpack.c.l.b16 %v1786
    %v2483 = vunpack.c.l.b16 %v1787
    %v2484 = vunpack.c.h.b16 %v1787
    %v2485 = vunpack.c.l.b16 %v1788
    %v2486 = vunpack.c.h.b16 %v1788
    %v2487 = vunpack.c.l.b16 %v1789
    %v2488 = vunpack.c.h.b16 %v1789
    %v2489 = vunpack.c.l.b16 %v1790
    %v2490 = vunpack.c.l.b16 %v1791
    %v2491 = vunpack.c.h.b16 %v1791
    %v2492 = vunpack.c.l.b16 %v1792
    %v2493 = vunpack.c.h.b16 %v1792
    %v2494 = vunpack.c.l.b16 %v1793
    %v2495 = vunpack.c.h.b16 %v1793
    %v2496 = vunpack.c.l.b16 %v1794
    %v2497 = vunpack.c.l.b16 %v1795
    %v2498 = vunpack.c.h.b16 %v1795
    %v2499 = vunpack.c.l.b16 %v1796
    %v2500 = vunpack.c.h.b16 %v1796
    %v2501 = vunpack.c.l.b16 %v1797
    %v2502 = vunpack.c.h.b16 %v1797
    %v2503 = vunpack.c.l.b16 %v1798
    %v2504 = vunpack.c.l.b16 %v1799
    %v2505 = vunpack.c.h.b16 %v1799
    %v2506 = vunpack.c.l.b16 %v1800
    %v2507 = vunpack.c.h.b16 %v1800
    %v2508 = vunpack.c.l.b16 %v1801
    %v2509 = vunpack.c.h.b16 %v1801
    %v2510 = vunpack.c.l.b16 %v1802
    %v2511 = vunpack.c.l.b16 %v1803
    %v2512 = vunpack.c.h.b16 %v1803
    %v2513 = vunpack.c.l.b16 %v1804
    %v2514 = vunpack.c.h.b16 %v1804
    %v2515 = vunpack.c.l.b16 %v1805
    %v2516 = vunpack.c.h.b16 %v1805
    %v2517 = vunpack.c.l.b16 %v1806
    %v2518 = vunpack.c.l.b16 %v1807
    %v2519 = vunpack.c.h.b16 %v1807
    %v2520 = vunpack.c.l.b16 %v1808
    %v2521 = vunpack.c.h.b16 %v1808
    %v2522 = vunpack.c.l.b16 %v1809
    %v2523 = vunpack.c.h.b16 %v1809
    %v2524 = vunpack.c.l.b16 %v1810
    %v2525 = vunpack.c.l.b16 %v1811
    %v2526 = vunpack.c.h.b16 %v1811
    %v2527 = vunpack.c.l.b16 %v1812
    %v2528 = vunpack.c.h.b16 %v1812
    %v2529 = vunpack.c.l.b16 %v1813
    %v2530 = vunpack.c.h.b16 %v1813
    %v2531 = vunpack.c.l.b16 %v1814
    %v2532 = vunpack.c.l.b16 %v1815
    %v2533 = vunpack.c.h.b16 %v1815
    %v2534 = vunpack.c.l.b16 %v1816
    %v2535 = vunpack.c.h.b16 %v1816
    %v2536 = vunpack.c.l.b16 %v1817
    %v2537 = vunpack.c.h.b16 %v1817
    %v2538 = vunpack.c.l.b16 %v1818
    %v2539 = vunpack.c.l.b16 %v1819
    %v2540 = vunpack.c.h.b16 %v1819
    %v2541 = vunpack.c.l.b16 %v1820
    %v2542 = vunpack.c.h.b16 %v1820
    %v2543 = vunpack.c.l.b16 %v1821
    %v2544 = vunpack.c.h.b16 %v1821
    %v2545 = vunpack.c.l.b16 %v1822
    %v2546 = vunpack.c.l.b16 %v1823
    %v2547 = vunpack.c.h.b16 %v1823
    %v2548 = vunpack.c.l.b16 %v1824
    %v2549 = vunpack.c.h.b16 %v1824
    %v2550 = vunpack.c.l.b16 %v1825
    %v2551 = vunpack.c.h.b16 %v1825
    %v2552 = vunpack.c.l.b16 %v1826
    %v2553 = vunpack.c.l.b16 %v1827
    %v2554 = vunpack.c.h.b16 %v1827
    %v2555 = vunpack.c.l.b16 %v1828
    %v2556 = vunpack.c.h.b16 %v1828
    %v2557 = vunpack.c.l.b16 %v1829
    %v2558 = vunpack.c.h.b16 %v1829
    %v2559 = vunpack.c.l.b16 %v1830
    %v2560 = vunpack.c.l.b16 %v1831
    %v2561 = vunpack.c.h.b16 %v1831
    %v2562 = vunpack.c.l.b16 %v1832
    %v2563 = vunpack.c.h.b16 %v1832
    %v2564 = vunpack.c.l.b16 %v1833
    %v2565 = vunpack.c.h.b16 %v1833
    %v2566 = vunpack.c.l.b16 %v1834
    %v2567 = vunpack.c.l.b16 %v1835
    %v2568 = vunpack.c.h.b16 %v1835
    %v2569 = vunpack.c.l.b16 %v1836
    %v2570 = vunpack.c.h.b16 %v1836
    %v2571 = vunpack.c.l.b16 %v1837
    %v2572 = vunpack.c.h.b16 %v1837
    %v2573 = vunpack.c.l.b16 %v1838
    %v2574 = vunpack.c.l.b16 %v1839
    %v2575 = vunpack.c.h.b16 %v1839
    %v2576 = vunpack.c.l.b16 %v1840
    %v2577 = vunpack.c.h.b16 %v1840
    %v2578 = vunpack.c.l.b16 %v1841
    %v2579 = vunpack.c.h.b16 %v1841
    %v2580 = vunpack.c.l.b16 %v1842
    %v2581 = vunpack.c.l.b16 %v1843
    %v2582 = vunpack.c.h.b16 %v1843
    %v2583 = vunpack.c.l.b16 %v1844
    %v2584 = vunpack.c.h.b16 %v1844
    %v2585 = vunpack.c.l.b16 %v1845
    %v2586 = vunpack.c.h.b16 %v1845
    %v2587 = vunpack.c.l.b16 %v1846
    %v2588 = vpack.c.b16 %v2147, %v2140
    %v2589 = vpack.c.b16 %v2148, %v2141
    %v2590 = vpack.c.b16 %v2149, %v2142
    %v2591 = vpack.c.b16 %v2150, %v2143
    %v2592 = vpack.c.b16 %v2151, %v2144
    %v2593 = vpack.c.b16 %v2152, %v2145
    %v2594 = vpack.c.b16 %v2153, %v2146
    %v2595 = vpack.c.b16 %v2161, %v2154
    %v2596 = vpack.c.b16 %v2162, %v2155
    %v2597 = vpack.c.b16 %v2163, %v2156
    %v2598 = vpack.c.b16 %v2164, %v2157
    %v2599 = vpack.c.b16 %v2165, %v2158
    %v2600 = vpack.c.b16 %v2166, %v2159
    %v2601 = vpack.c.b16 %v2167, %v2160
    %v2602 = vpack.c.b16 %v2175, %v2168
    %v2603 = vpack.c.b16 %v2176, %v2169
    %v2604 = vpack.c.b16 %v2177, %v2170
    %v2605 = vpack.c.b16 %v2178, %v2171
    %v2606 = vpack.c.b16 %v2179, %v2172
    %v2607 = vpack.c.b16 %v2180, %v2173
    %v2608 = vpack.c.b16 %v2181, %v2174
    %v2609 = vpack.c.b16 %v2189, %v2182
    %v2610 = vpack.c.b16 %v2190, %v2183
    %v2611 = vpack.c.b16 %v2191, %v2184
    %v2612 = vpack.c.b16 %v2192, %v2185
    %v2613 = vpack.c.b16 %v2193, %v2186
    %v2614 = vpack.c.b16 %v2194, %v2187
    %v2615 = vpack.c.b16 %v2195, %v2188
    %v2616 = vpack.c.b16 %v2203, %v2196
    %v2617 = vpack.c.b16 %v2204, %v2197
    %v2618 = vpack.c.b16 %v2205, %v2198
    %v2619 = vpack.c.b16 %v2206, %v2199
    %v2620 = vpack.c.b16 %v2207, %v2200
    %v2621 = vpack.c.b16 %v2208, %v2201
    %v2622 = vpack.c.b16 %v2209, %v2202
    %v2623 = vpack.c.b16 %v2217, %v2210
    %v2624 = vpack.c.b16 %v2218, %v2211
    %v2625 = vpack.c.b16 %v2219, %v2212
    %v2626 = vpack.c.b16 %v2220, %v2213
    %v2627 = vpack.c.b16 %v2221, %v2214
    %v2628 = vpack.c.b16 %v2222, %v2215
    %v2629 = vpack.c.b16 %v2223, %v2216
    %v2630 = vpack.c.b16 %v2231, %v2224
    %v2631 = vpack.c.b16 %v2232, %v2225
    %v2632 = vpack.c.b16 %v2233, %v2226
    %v2633 = vpack.c.b16 %v2234, %v2227
    %v2634 = vpack.c.b16 %v2235, %v2228
    %v2635 = vpack.c.b16 %v2236, %v2229
    %v2636 = vpack.c.b16 %v2237, %v2230
    %v2637 = vpack.c.b16 %v2245, %v2238
    %v2638 = vpack.c.b16 %v2246, %v2239
    %v2639 = vpack.c.b16 %v2247, %v2240
    %v2640 = vpack.c.b16 %v2248, %v2241
    %v2641 = vpack.c.b16 %v2249, %v2242
    %v2642 = vpack.c.b16 %v2250, %v2243
    %v2643 = vpack.c.b16 %v2251, %v2244
    %v2644 = vpack.c.b16 %v2259, %v2252
    %v2645 = vpack.c.b16 %v2260, %v2253
    %v2646 = vpack.c.b16 %v2261, %v2254
    %v2647 = vpack.c.b16 %v2262, %v2255
    %v2648 = vpack.c.b16 %v2263, %v2256
    %v2649 = vpack.c.b16 %v2264, %v2257
    %v2650 = vpack.c.b16 %v2265, %v2258
    %v2651 = vpack.c.b16 %v2273, %v2266
    %v2652 = vpack.c.b16 %v2274, %v2267
    %v2653 = vpack.c.b16 %v2275, %v2268
    %v2654 = vpack.c.b16 %v2276, %v2269
    %v2655 = vpack.c.b16 %v2277, %v2270
    %v2656 = vpack.c.b16 %v2278, %v2271
    %v2657 = vpack.c.b16 %v2279, %v2272
    %v2658 = vpack.c.b16 %v2287, %v2280
    %v2659 = vpack.c.b16 %v2288, %v2281
    %v2660 = vpack.c.b16 %v2289, %v2282
    %v2661 = vpack.c.b16 %v2290, %v2283
    %v2662 = vpack.c.b16 %v2291, %v2284
    %v2663 = vpack.c.b16 %v2292, %v2285
    %v2664 = vpack.c.b16 %v2293, %v2286
    %v2665 = vpack.c.b16 %v2301, %v2294
    %v2666 = vpack.c.b16 %v2302, %v2295
    %v2667 = vpack.c.b16 %v2303, %v2296
    %v2668 = vpack.c.b16 %v2304, %v2297
    %v2669 = vpack.c.b16 %v2305, %v2298
    %v2670 = vpack.c.b16 %v2306, %v2299
    %v2671 = vpack.c.b16 %v2307, %v2300
    %v2672 = vpack.c.b16 %v2315, %v2308
    %v2673 = vpack.c.b16 %v2316, %v2309
    %v2674 = vpack.c.b16 %v2317, %v2310
    %v2675 = vpack.c.b16 %v2318, %v2311
    %v2676 = vpack.c.b16 %v2319, %v2312
    %v2677 = vpack.c.b16 %v2320, %v2313
    %v2678 = vpack.c.b16 %v2321, %v2314
    %v2679 = vpack.c.b16 %v2329, %v2322
    %v2680 = vpack.c.b16 %v2330, %v2323
    %v2681 = vpack.c.b16 %v2331, %v2324
    %v2682 = vpack.c.b16 %v2332, %v2325
    %v2683 = vpack.c.b16 %v2333, %v2326
    %v2684 = vpack.c.b16 %v2334, %v2327
    %v2685 = vpack.c.b16 %v2335, %v2328
    %v2686 = vpack.c.b16 %v2343, %v2336
    %v2687 = vpack.c.b16 %v2344, %v2337
    %v2688 = vpack.c.b16 %v2345, %v2338
    %v2689 = vpack.c.b16 %v2346, %v2339
    %v2690 = vpack.c.b16 %v2347, %v2340
    %v2691 = vpack.c.b16 %v2348, %v2341
    %v2692 = vpack.c.b16 %v2349, %v2342
    %v2693 = vpack.c.b16 %v2357, %v2350
    %v2694 = vpack.c.b16 %v2358, %v2351
    %v2695 = vpack.c.b16 %v2359, %v2352
    %v2696 = vpack.c.b16 %v2360, %v2353
    %v2697 = vpack.c.b16 %v2361, %v2354
    %v2698 = vpack.c.b16 %v2362, %v2355
    %v2699 = vpack.c.b16 %v2363, %v2356
    %v2700 = vpack.c.b16 %v2371, %v2364
    %v2701 = vpack.c.b16 %v2372, %v2365
    %v2702 = vpack.c.b16 %v2373, %v2366
    %v2703 = vpack.c.b16 %v2374, %v2367
    %v2704 = vpack.c.b16 %v2375, %v2368
    %v2705 = vpack.c.b16 %v2376, %v2369
    %v2706 = vpack.c.b16 %v2377, %v2370
    %v2707 = vpack.c.b16 %v2385, %v2378
    %v2708 = vpack.c.b16 %v2386, %v2379
    %v2709 = vpack.c.b16 %v2387, %v2380
    %v2710 = vpack.c.b16 %v2388, %v2381
    %v2711 = vpack.c.b16 %v2389, %v2382
    %v2712 = vpack.c.b16 %v2390, %v2383
    %v2713 = vpack.c.b16 %v2391, %v2384
    %v2714 = vpack.c.b16 %v2399, %v2392
    %v2715 = vpack.c.b16 %v2400, %v2393
    %v2716 = vpack.c.b16 %v2401, %v2394
    %v2717 = vpack.c.b16 %v2402, %v2395
    %v2718 = vpack.c.b16 %v2403, %v2396
    %v2719 = vpack.c.b16 %v2404, %v2397
    %v2720 = vpack.c.b16 %v2405, %v2398
    %v2721 = vpack.c.b16 %v2413, %v2406
    %v2722 = vpack.c.b16 %v2414, %v2407
    %v2723 = vpack.c.b16 %v2415, %v2408
    %v2724 = vpack.c.b16 %v2416, %v2409
    %v2725 = vpack.c.b16 %v2417, %v2410
    %v2726 = vpack.c.b16 %v2418, %v2411
    %v2727 = vpack.c.b16 %v2419, %v2412
    %v2728 = vpack.c.b16 %v2427, %v2420
    %v2729 = vpack.c.b16 %v2428, %v2421
    %v2730 = vpack.c.b16 %v2429, %v2422
    %v2731 = vpack.c.b16 %v2430, %v2423
    %v2732 = vpack.c.b16 %v2431, %v2424
    %v2733 = vpack.c.b16 %v2432, %v2425
    %v2734 = vpack.c.b16 %v2433, %v2426
    %v2735 = vpack.c.b16 %v2441, %v2434
    %v2736 = vpack.c.b16 %v2442, %v2435
    %v2737 = vpack.c.b16 %v2443, %v2436
    %v2738 = vpack.c.b16 %v2444, %v2437
    %v2739 = vpack.c.b16 %v2445, %v2438
    %v2740 = vpack.c.b16 %v2446, %v2439
    %v2741 = vpack.c.b16 %v2447, %v2440
    %v2742 = vpack.c.b16 %v2455, %v2448
    %v2743 = vpack.c.b16 %v2456, %v2449
    %v2744 = vpack.c.b16 %v2457, %v2450
    %v2745 = vpack.c.b16 %v2458, %v2451
    %v2746 = vpack.c.b16 %v2459, %v2452
    %v2747 = vpack.c.b16 %v2460, %v2453
    %v2748 = vpack.c.b16 %v2461, %v2454
    %v2749 = vpack.c.b16 %v2469, %v2462
    %v2750 = vpack.c.b16 %v2470, %v2463
    %v2751 = vpack.c.b16 %v2471, %v2464
    %v2752 = vpack.c.b16 %v2472, %v2465
    %v2753 = vpack.c.b16 %v2473, %v2466
    %v2754 = vpack.c.b16 %v2474, %v2467
    %v2755 = vpack.c.b16 %v2475, %v2468
    %v2756 = vpack.c.b16 %v2483, %v2476
    %v2757 = vpack.c.b16 %v2484, %v2477
    %v2758 = vpack.c.b16 %v2485, %v2478
    %v2759 = vpack.c.b16 %v2486, %v2479
    %v2760 = vpack.c.b16 %v2487, %v2480
    %v2761 = vpack.c.b16 %v2488, %v2481
    %v2762 = vpack.c.b16 %v2489, %v2482
    %v2763 = vpack.c.b16 %v2497, %v2490
    %v2764 = vpack.c.b16 %v2498, %v2491
    %v2765 = vpack.c.b16 %v2499, %v2492
    %v2766 = vpack.c.b16 %v2500, %v2493
    %v2767 = vpack.c.b16 %v2501, %v2494
    %v2768 = vpack.c.b16 %v2502, %v2495
    %v2769 = vpack.c.b16 %v2503, %v2496
    %v2770 = vpack.c.b16 %v2511, %v2504
    %v2771 = vpack.c.b16 %v2512, %v2505
    %v2772 = vpack.c.b16 %v2513, %v2506
    %v2773 = vpack.c.b16 %v2514, %v2507
    %v2774 = vpack.c.b16 %v2515, %v2508
    %v2775 = vpack.c.b16 %v2516, %v2509
    %v2776 = vpack.c.b16 %v2517, %v2510
    %v2777 = vpack.c.b16 %v2525, %v2518
    %v2778 = vpack.c.b16 %v2526, %v2519
    %v2779 = vpack.c.b16 %v2527, %v2520
    %v2780 = vpack.c.b16 %v2528, %v2521
    %v2781 = vpack.c.b16 %v2529, %v2522
    %v2782 = vpack.c.b16 %v2530, %v2523
    %v2783 = vpack.c.b16 %v2531, %v2524
    %v2784 = vpack.c.b16 %v2539, %v2532
    %v2785 = vpack.c.b16 %v2540, %v2533
    %v2786 = vpack.c.b16 %v2541, %v2534
    %v2787 = vpack.c.b16 %v2542, %v2535
    %v2788 = vpack.c.b16 %v2543, %v2536
    %v2789 = vpack.c.b16 %v2544, %v2537
    %v2790 = vpack.c.b16 %v2545, %v2538
    %v2791 = vpack.c.b16 %v2553, %v2546
    %v2792 = vpack.c.b16 %v2554, %v2547
    %v2793 = vpack.c.b16 %v2555, %v2548
    %v2794 = vpack.c.b16 %v2556, %v2549
    %v2795 = vpack.c.b16 %v2557, %v2550
    %v2796 = vpack.c.b16 %v2558, %v2551
    %v2797 = vpack.c.b16 %v2559, %v2552
    %v2798 = vpack.c.b16 %v2567, %v2560
    %v2799 = vpack.c.b16 %v2568, %v2561
    %v2800 = vpack.c.b16 %v2569, %v2562
    %v2801 = vpack.c.b16 %v2570, %v2563
    %v2802 = vpack.c.b16 %v2571, %v2564
    %v2803 = vpack.c.b16 %v2572, %v2565
    %v2804 = vpack.c.b16 %v2573, %v2566
    %v2805 = vpack.c.b16 %v2581, %v2574
    %v2806 = vpack.c.b16 %v2582, %v2575
    %v2807 = vpack.c.b16 %v2583, %v2576
    %v2808 = vpack.c.b16 %v2584, %v2577
    %v2809 = vpack.c.b16 %v2585, %v2578
    %v2810 = vpack.c.b16 %v2586, %v2579
    %v2811 = vpack.c.b16 %v2587, %v2580
    %3036 = vmatprep.subr.bf16.mxu0 %v2589
    %3037 = vmatpush1.bf16.msra.mxu0 %v2588
    %3038 = vmatprep.subr.bf16.mxu0 %v2596
    %3039 = vmatpush1.bf16.msra.mxu0 %v2595
    %3040 = vmatprep.subr.bf16.mxu0 %v2603
    %3041 = vmatpush1.bf16.msra.mxu0 %v2602
    %3042 = vmatprep.subr.bf16.mxu0 %v2610
    %3043 = vmatpush1.bf16.msra.mxu0 %v2609
    %3044 = vmatprep.subr.bf16.mxu0 %v2617
    %3045 = vmatpush1.bf16.msra.mxu0 %v2616
    %3046 = vmatprep.subr.bf16.mxu0 %v2624
    %3047 = vmatpush1.bf16.msra.mxu0 %v2623
    %3048 = vmatprep.subr.bf16.mxu0 %v2631
    %3049 = vmatpush1.bf16.msra.mxu0 %v2630
    %3050 = vmatprep.subr.bf16.mxu0 %v2638
    %3051 = vmatpush1.bf16.msra.mxu0 %v2637
    %3052 = vmatprep.subr.bf16.mxu0 %v2645
    %3053 = vmatpush1.bf16.msra.mxu0 %v2644
    %3054 = vmatprep.subr.bf16.mxu0 %v2652
    %3055 = vmatpush1.bf16.msra.mxu0 %v2651
    %3056 = vmatprep.subr.bf16.mxu0 %v2659
    %3057 = vmatpush1.bf16.msra.mxu0 %v2658
    %3058 = vmatprep.subr.bf16.mxu0 %v2666
    %3059 = vmatpush1.bf16.msra.mxu0 %v2665
    %3060 = vmatprep.subr.bf16.mxu0 %v2673
    %3061 = vmatpush1.bf16.msra.mxu0 %v2672
    %3062 = vmatprep.subr.bf16.mxu0 %v2680
    %3063 = vmatpush1.bf16.msra.mxu0 %v2679
    %3064 = vmatprep.subr.bf16.mxu0 %v2687
    %3065 = vmatpush1.bf16.msra.mxu0 %v2686
    %3066 = vmatprep.subr.bf16.mxu0 %v2694
    %3067 = vmatpush1.bf16.msra.mxu0 %v2693
    %3068 = vmatprep.mubr.bf16.mxu0 %v1588
    %3069 = vmatmul.mubr.bf16.gmra.mrb[0].mxu0 %v1587
    %v3070 = vpop.f32.mrb[0].mxu0
    %v3071 = vadd.f32 %v1852, %v3070
    %v3072 = vpop.f32.mrb[0].mxu0
    %v3073 = vadd.f32 %v1856, %v3072
    %v3074 = vpop.f32.mrb[0].mxu0
    %v3075 = vadd.f32 %v1852, %v3074
    %v3076 = vpop.f32.mrb[0].mxu0
    %v3077 = vadd.f32 %v1856, %v3076
    %3078 = vdwg.mxu0
    %3079 = vmatprep.subr.bf16.mxu0 %v2701
    %3080 = vmatpush1.bf16.msra.mxu0 %v2700
    %3081 = vmatprep.subr.bf16.mxu0 %v2708
    %3082 = vmatpush1.bf16.msra.mxu0 %v2707
    %3083 = vmatprep.subr.bf16.mxu0 %v2715
    %3084 = vmatpush1.bf16.msra.mxu0 %v2714
    %3085 = vmatprep.subr.bf16.mxu0 %v2722
    %3086 = vmatpush1.bf16.msra.mxu0 %v2721
    %3087 = vmatprep.subr.bf16.mxu0 %v2729
    %3088 = vmatpush1.bf16.msra.mxu0 %v2728
    %3089 = vmatprep.subr.bf16.mxu0 %v2736
    %3090 = vmatpush1.bf16.msra.mxu0 %v2735
    %3091 = vmatprep.subr.bf16.mxu0 %v2743
    %3092 = vmatpush1.bf16.msra.mxu0 %v2742
    %3093 = vmatprep.subr.bf16.mxu0 %v2750
    %3094 = vmatpush1.bf16.msra.mxu0 %v2749
    %3095 = vmatprep.subr.bf16.mxu0 %v2757
    %3096 = vmatpush1.bf16.msra.mxu0 %v2756
    %3097 = vmatprep.subr.bf16.mxu0 %v2764
    %3098 = vmatpush1.bf16.msra.mxu0 %v2763
    %3099 = vmatprep.subr.bf16.mxu0 %v2771
    %3100 = vmatpush1.bf16.msra.mxu0 %v2770
    %3101 = vmatprep.subr.bf16.mxu0 %v2778
    %3102 = vmatpush1.bf16.msra.mxu0 %v2777
    %3103 = vmatprep.subr.bf16.mxu0 %v2785
    %3104 = vmatpush1.bf16.msra.mxu0 %v2784
    %3105 = vmatprep.subr.bf16.mxu0 %v2792
    %3106 = vmatpush1.bf16.msra.mxu0 %v2791
    %3107 = vmatprep.subr.bf16.mxu0 %v2799
    %3108 = vmatpush1.bf16.msra.mxu0 %v2798
    %3109 = vmatprep.subr.bf16.mxu0 %v2806
    %3110 = vmatpush1.bf16.msra.mxu0 %v2805
    %3111 = vmatprep.mubr.bf16.mxu0 %v1590
    %3112 = vmatmul.mubr.bf16.gmra.mrb[0].mxu0 %v1589
    %v3113 = vpop.f32.mrb[0].mxu0
    %v3114 = vadd.f32 %v3071, %v3113
    %v3115 = vpop.f32.mrb[0].mxu0
    %v3116 = vadd.f32 %v3073, %v3115
    %v3117 = vpop.f32.mrb[0].mxu0
    %v3118 = vadd.f32 %v3075, %v3117
    %v3119 = vpop.f32.mrb[0].mxu0
    %v3120 = vadd.f32 %v3077, %v3119
    %3121 = vdwg.mxu0
    %3122 = vmatprep.subr.bf16.mxu0 %v2591
    %3123 = vmatpush1.bf16.msra.mxu0 %v2590
    %3124 = vmatprep.subr.bf16.mxu0 %v2598
    %3125 = vmatpush1.bf16.msra.mxu0 %v2597
    %3126 = vmatprep.subr.bf16.mxu0 %v2605
    %3127 = vmatpush1.bf16.msra.mxu0 %v2604
    %3128 = vmatprep.subr.bf16.mxu0 %v2612
    %3129 = vmatpush1.bf16.msra.mxu0 %v2611
    %3130 = vmatprep.subr.bf16.mxu0 %v2619
    %3131 = vmatpush1.bf16.msra.mxu0 %v2618
    %3132 = vmatprep.subr.bf16.mxu0 %v2626
    %3133 = vmatpush1.bf16.msra.mxu0 %v2625
    %3134 = vmatprep.subr.bf16.mxu0 %v2633
    %3135 = vmatpush1.bf16.msra.mxu0 %v2632
    %3136 = vmatprep.subr.bf16.mxu0 %v2640
    %3137 = vmatpush1.bf16.msra.mxu0 %v2639
    %3138 = vmatprep.subr.bf16.mxu0 %v2647
    %3139 = vmatpush1.bf16.msra.mxu0 %v2646
    %3140 = vmatprep.subr.bf16.mxu0 %v2654
    %3141 = vmatpush1.bf16.msra.mxu0 %v2653
    %3142 = vmatprep.subr.bf16.mxu0 %v2661
    %3143 = vmatpush1.bf16.msra.mxu0 %v2660
    %3144 = vmatprep.subr.bf16.mxu0 %v2668
    %3145 = vmatpush1.bf16.msra.mxu0 %v2667
    %3146 = vmatprep.subr.bf16.mxu0 %v2675
    %3147 = vmatpush1.bf16.msra.mxu0 %v2674
    %3148 = vmatprep.subr.bf16.mxu0 %v2682
    %3149 = vmatpush1.bf16.msra.mxu0 %v2681
    %3150 = vmatprep.subr.bf16.mxu0 %v2689
    %3151 = vmatpush1.bf16.msra.mxu0 %v2688
    %3152 = vmatprep.subr.bf16.mxu0 %v2696
    %3153 = vmatpush1.bf16.msra.mxu0 %v2695
    %3154 = vmatprep.mubr.bf16.mxu0 %v1588
    %3155 = vmatmul.mubr.bf16.gmra.mrb[0].mxu0 %v1587
    %v3156 = vpop.f32.mrb[0].mxu0
    %v3157 = vadd.f32 %v1860, %v3156
    %v3158 = vpop.f32.mrb[0].mxu0
    %v3159 = vadd.f32 %v1864, %v3158
    %v3160 = vpop.f32.mrb[0].mxu0
    %v3161 = vadd.f32 %v1860, %v3160
    %v3162 = vpop.f32.mrb[0].mxu0
    %v3163 = vadd.f32 %v1864, %v3162
    %3164 = vdwg.mxu0
    %3165 = vmatprep.subr.bf16.mxu0 %v2703
    %3166 = vmatpush1.bf16.msra.mxu0 %v2702
    %3167 = vmatprep.subr.bf16.mxu0 %v2710
    %3168 = vmatpush1.bf16.msra.mxu0 %v2709
    %3169 = vmatprep.subr.bf16.mxu0 %v2717
    %3170 = vmatpush1.bf16.msra.mxu0 %v2716
    %3171 = vmatprep.subr.bf16.mxu0 %v2724
    %3172 = vmatpush1.bf16.msra.mxu0 %v2723
    %3173 = vmatprep.subr.bf16.mxu0 %v2731
    %3174 = vmatpush1.bf16.msra.mxu0 %v2730
    %3175 = vmatprep.subr.bf16.mxu0 %v2738
    %3176 = vmatpush1.bf16.msra.mxu0 %v2737
    %3177 = vmatprep.subr.bf16.mxu0 %v2745
    %3178 = vmatpush1.bf16.msra.mxu0 %v2744
    %3179 = vmatprep.subr.bf16.mxu0 %v2752
    %3180 = vmatpush1.bf16.msra.mxu0 %v2751
    %3181 = vmatprep.subr.bf16.mxu0 %v2759
    %3182 = vmatpush1.bf16.msra.mxu0 %v2758
    %3183 = vmatprep.subr.bf16.mxu0 %v2766
    %3184 = vmatpush1.bf16.msra.mxu0 %v2765
    %3185 = vmatprep.subr.bf16.mxu0 %v2773
    %3186 = vmatpush1.bf16.msra.mxu0 %v2772
    %3187 = vmatprep.subr.bf16.mxu0 %v2780
    %3188 = vmatpush1.bf16.msra.mxu0 %v2779
    %3189 = vmatprep.subr.bf16.mxu0 %v2787
    %3190 = vmatpush1.bf16.msra.mxu0 %v2786
    %3191 = vmatprep.subr.bf16.mxu0 %v2794
    %3192 = vmatpush1.bf16.msra.mxu0 %v2793
    %3193 = vmatprep.subr.bf16.mxu0 %v2801
    %3194 = vmatpush1.bf16.msra.mxu0 %v2800
    %3195 = vmatprep.subr.bf16.mxu0 %v2808
    %3196 = vmatpush1.bf16.msra.mxu0 %v2807
    %3197 = vmatprep.mubr.bf16.mxu0 %v1590
    %3198 = vmatmul.mubr.bf16.gmra.mrb[0].mxu0 %v1589
    %v3199 = vpop.f32.mrb[0].mxu0
    %v3200 = vadd.f32 %v3157, %v3199
    %v3201 = vpop.f32.mrb[0].mxu0
    %v3202 = vadd.f32 %v3159, %v3201
    %v3203 = vpop.f32.mrb[0].mxu0
    %v3204 = vadd.f32 %v3161, %v3203
    %v3205 = vpop.f32.mrb[0].mxu0
    %v3206 = vadd.f32 %v3163, %v3205
    %3207 = vdwg.mxu0
    %3208 = vmatprep.subr.bf16.mxu0 %v2593
    %3209 = vmatpush1.bf16.msra.mxu0 %v2592
    %3210 = vmatprep.subr.bf16.mxu0 %v2600
    %3211 = vmatpush1.bf16.msra.mxu0 %v2599
    %3212 = vmatprep.subr.bf16.mxu0 %v2607
    %3213 = vmatpush1.bf16.msra.mxu0 %v2606
    %3214 = vmatprep.subr.bf16.mxu0 %v2614
    %3215 = vmatpush1.bf16.msra.mxu0 %v2613
    %3216 = vmatprep.subr.bf16.mxu0 %v2621
    %3217 = vmatpush1.bf16.msra.mxu0 %v2620
    %3218 = vmatprep.subr.bf16.mxu0 %v2628
    %3219 = vmatpush1.bf16.msra.mxu0 %v2627
    %3220 = vmatprep.subr.bf16.mxu0 %v2635
    %3221 = vmatpush1.bf16.msra.mxu0 %v2634
    %3222 = vmatprep.subr.bf16.mxu0 %v2642
    %3223 = vmatpush1.bf16.msra.mxu0 %v2641
    %3224 = vmatprep.subr.bf16.mxu0 %v2649
    %3225 = vmatpush1.bf16.msra.mxu0 %v2648
    %3226 = vmatprep.subr.bf16.mxu0 %v2656
    %3227 = vmatpush1.bf16.msra.mxu0 %v2655
    %3228 = vmatprep.subr.bf16.mxu0 %v2663
    %3229 = vmatpush1.bf16.msra.mxu0 %v2662
    %3230 = vmatprep.subr.bf16.mxu0 %v2670
    %3231 = vmatpush1.bf16.msra.mxu0 %v2669
    %3232 = vmatprep.subr.bf16.mxu0 %v2677
    %3233 = vmatpush1.bf16.msra.mxu0 %v2676
    %3234 = vmatprep.subr.bf16.mxu0 %v2684
    %3235 = vmatpush1.bf16.msra.mxu0 %v2683
    %3236 = vmatprep.subr.bf16.mxu0 %v2691
    %3237 = vmatpush1.bf16.msra.mxu0 %v2690
    %3238 = vmatprep.subr.bf16.mxu0 %v2698
    %3239 = vmatpush1.bf16.msra.mxu0 %v2697
    %3240 = vmatprep.mubr.bf16.mxu0 %v1588
    %3241 = vmatmul.mubr.bf16.gmra.mrb[0].mxu0 %v1587
    %v3242 = vpop.f32.mrb[0].mxu0
    %v3243 = vadd.f32 %v1868, %v3242
    %v3244 = vpop.f32.mrb[0].mxu0
    %v3245 = vadd.f32 %v1872, %v3244
    %v3246 = vpop.f32.mrb[0].mxu0
    %v3247 = vadd.f32 %v1868, %v3246
    %v3248 = vpop.f32.mrb[0].mxu0
    %v3249 = vadd.f32 %v1872, %v3248
    %3250 = vdwg.mxu0
    %3251 = vmatprep.subr.bf16.mxu0 %v2705
    %3252 = vmatpush1.bf16.msra.mxu0 %v2704
    %3253 = vmatprep.subr.bf16.mxu0 %v2712
    %3254 = vmatpush1.bf16.msra.mxu0 %v2711
    %3255 = vmatprep.subr.bf16.mxu0 %v2719
    %3256 = vmatpush1.bf16.msra.mxu0 %v2718
    %3257 = vmatprep.subr.bf16.mxu0 %v2726
    %3258 = vmatpush1.bf16.msra.mxu0 %v2725
    %3259 = vmatprep.subr.bf16.mxu0 %v2733
    %3260 = vmatpush1.bf16.msra.mxu0 %v2732
    %3261 = vmatprep.subr.bf16.mxu0 %v2740
    %3262 = vmatpush1.bf16.msra.mxu0 %v2739
    %3263 = vmatprep.subr.bf16.mxu0 %v2747
    %3264 = vmatpush1.bf16.msra.mxu0 %v2746
    %3265 = vmatprep.subr.bf16.mxu0 %v2754
    %3266 = vmatpush1.bf16.msra.mxu0 %v2753
    %3267 = vmatprep.subr.bf16.mxu0 %v2761
    %3268 = vmatpush1.bf16.msra.mxu0 %v2760
    %3269 = vmatprep.subr.bf16.mxu0 %v2768
    %3270 = vmatpush1.bf16.msra.mxu0 %v2767
    %3271 = vmatprep.subr.bf16.mxu0 %v2775
    %3272 = vmatpush1.bf16.msra.mxu0 %v2774
    %3273 = vmatprep.subr.bf16.mxu0 %v2782
    %3274 = vmatpush1.bf16.msra.mxu0 %v2781
    %3275 = vmatprep.subr.bf16.mxu0 %v2789
    %3276 = vmatpush1.bf16.msra.mxu0 %v2788
    %3277 = vmatprep.subr.bf16.mxu0 %v2796
    %3278 = vmatpush1.bf16.msra.mxu0 %v2795
    %3279 = vmatprep.subr.bf16.mxu0 %v2803
    %3280 = vmatpush1.bf16.msra.mxu0 %v2802
    %3281 = vmatprep.subr.bf16.mxu0 %v2810
    %3282 = vmatpush1.bf16.msra.mxu0 %v2809
    %3283 = vmatprep.mubr.bf16.mxu0 %v1590
    %3284 = vmatmul.mubr.bf16.gmra.mrb[0].mxu0 %v1589
    %v3285 = vpop.f32.mrb[0].mxu0
    %v3286 = vadd.f32 %v3243, %v3285
    %v3287 = vpop.f32.mrb[0].mxu0
    %v3288 = vadd.f32 %v3245, %v3287
    %v3289 = vpop.f32.mrb[0].mxu0
    %v3290 = vadd.f32 %v3247, %v3289
    %v3291 = vpop.f32.mrb[0].mxu0
    %v3292 = vadd.f32 %v3249, %v3291
    %3293 = vdwg.mxu0
    %3294 = vmatprep.subr.bf16.mxu0 0
    %3295 = vmatpush1.bf16.msra.mxu0 %v2594
    %3296 = vmatprep.subr.bf16.mxu0 0
    %3297 = vmatpush1.bf16.msra.mxu0 %v2601
    %3298 = vmatprep.subr.bf16.mxu0 0
    %3299 = vmatpush1.bf16.msra.mxu0 %v2608
    %3300 = vmatprep.subr.bf16.mxu0 0
    %3301 = vmatpush1.bf16.msra.mxu0 %v2615
    %3302 = vmatprep.subr.bf16.mxu0 0
    %3303 = vmatpush1.bf16.msra.mxu0 %v2622
    %3304 = vmatprep.subr.bf16.mxu0 0
    %3305 = vmatpush1.bf16.msra.mxu0 %v2629
    %3306 = vmatprep.subr.bf16.mxu0 0
    %3307 = vmatpush1.bf16.msra.mxu0 %v2636
    %3308 = vmatprep.subr.bf16.mxu0 0
    %3309 = vmatpush1.bf16.msra.mxu0 %v2643
    %3310 = vmatprep.subr.bf16.mxu0 0
    %3311 = vmatpush1.bf16.msra.mxu0 %v2650
    %3312 = vmatprep.subr.bf16.mxu0 0
    %3313 = vmatpush1.bf16.msra.mxu0 %v2657
    %3314 = vmatprep.subr.bf16.mxu0 0
    %3315 = vmatpush1.bf16.msra.mxu0 %v2664
    %3316 = vmatprep.subr.bf16.mxu0 0
    %3317 = vmatpush1.bf16.msra.mxu0 %v2671
    %3318 = vmatprep.subr.bf16.mxu0 0
    %3319 = vmatpush1.bf16.msra.mxu0 %v2678
    %3320 = vmatprep.subr.bf16.mxu0 0
    %3321 = vmatpush1.bf16.msra.mxu0 %v2685
    %3322 = vmatprep.subr.bf16.mxu0 0
    %3323 = vmatpush1.bf16.msra.mxu0 %v2692
    %3324 = vmatprep.subr.bf16.mxu0 0
    %3325 = vmatpush1.bf16.msra.mxu0 %v2699
    %3326 = vmatprep.mubr.bf16.mxu0 %v1588
    %3327 = vmatmul.mubr.bf16.gmra.mrb[0].mxu0 %v1587
    %v3328 = vpop.f32.mrb[0].mxu0
    %v3329 = vadd.f32 %v1876, %v3328
    %v3330 = vpop.f32.mrb[0].mxu0
    %v3331 = vpop.f32.mrb[0].mxu0
    %v3332 = vadd.f32 %v1876, %v3331
    %v3333 = vpop.f32.mrb[0].mxu0
    %3334 = vdwg.mxu0
    %3335 = vmatprep.subr.bf16.mxu0 0
    %3336 = vmatpush1.bf16.msra.mxu0 %v2706
    %3337 = vmatprep.subr.bf16.mxu0 0
    %3338 = vmatpush1.bf16.msra.mxu0 %v2713
    %3339 = vmatprep.subr.bf16.mxu0 0
    %3340 = vmatpush1.bf16.msra.mxu0 %v2720
    %3341 = vmatprep.subr.bf16.mxu0 0
    %3342 = vmatpush1.bf16.msra.mxu0 %v2727
    %3343 = vmatprep.subr.bf16.mxu0 0
    %3344 = vmatpush1.bf16.msra.mxu0 %v2734
    %3345 = vmatprep.subr.bf16.mxu0 0
    %3346 = vmatpush1.bf16.msra.mxu0 %v2741
    %3347 = vmatprep.subr.bf16.mxu0 0
    %3348 = vmatpush1.bf16.msra.mxu0 %v2748
    %3349 = vmatprep.subr.bf16.mxu0 0
    %3350 = vmatpush1.bf16.msra.mxu0 %v2755
    %3351 = vmatprep.subr.bf16.mxu0 0
    %3352 = vmatpush1.bf16.msra.mxu0 %v2762
    %3353 = vmatprep.subr.bf16.mxu0 0
    %3354 = vmatpush1.bf16.msra.mxu0 %v2769
    %3355 = vmatprep.subr.bf16.mxu0 0
    %3356 = vmatpush1.bf16.msra.mxu0 %v2776
    %3357 = vmatprep.subr.bf16.mxu0 0
    %3358 = vmatpush1.bf16.msra.mxu0 %v2783
    %3359 = vmatprep.subr.bf16.mxu0 0
    %3360 = vmatpush1.bf16.msra.mxu0 %v2790
    %3361 = vmatprep.subr.bf16.mxu0 0
    %3362 = vmatpush1.bf16.msra.mxu0 %v2797
    %3363 = vmatprep.subr.bf16.mxu0 0
    %3364 = vmatpush1.bf16.msra.mxu0 %v2804
    %3365 = vmatprep.subr.bf16.mxu0 0
    %3366 = vmatpush1.bf16.msra.mxu0 %v2811
    %3367 = vmatprep.mubr.bf16.mxu0 %v1590
    %3368 = vmatmul.mubr.bf16.gmra.mrb[0].mxu0 %v1589
    %v3369 = vpop.f32.mrb[0].mxu0
    %v3370 = vadd.f32 %v3329, %v3369
    %v3371 = vpop.f32.mrb[0].mxu0
    %v3372 = vpop.f32.mrb[0].mxu0
    %v3373 = vadd.f32 %v3332, %v3372
    %v3374 = vpop.f32.mrb[0].mxu0
    %3375 = vdwg.mxu0
    %v3376 = vsub.f32 0.0, %v3114
    %v3377 = vsub.f32 0.0, %v3116
    %v3378 = vsub.f32 0.0, %v3200
    %v3379 = vsub.f32 0.0, %v3202
    %v3380 = vsub.f32 0.0, %v3286
    %v3381 = vsub.f32 0.0, %v3288
    %v3382 = vsub.f32 0.0, %v3370
    %v3383 = vsub.f32 0.0, %v3118
    %v3384 = vsub.f32 0.0, %v3120
    %v3385 = vsub.f32 0.0, %v3204
    %v3386 = vsub.f32 0.0, %v3206
    %v3387 = vsub.f32 0.0, %v3290
    %v3388 = vsub.f32 0.0, %v3292
    %v3389 = vsub.f32 0.0, %v3373
    %v3390 = vmul.f32 %v3376, 1.442695
    %v3391 = vpow.pop %v3390
    %v3392 = vmul.f32 %v3377, 1.442695
    %v3393 = vpow.pop %v3392
    %v3394 = vmul.f32 %v3378, 1.442695
    %v3395 = vpow.pop %v3394
    %v3396 = vmul.f32 %v3379, 1.442695
    %v3397 = vpow.pop %v3396
    %v3398 = vmul.f32 %v3380, 1.442695
    %v3399 = vpow.pop %v3398
    %v3400 = vmul.f32 %v3381, 1.442695
    %v3401 = vpow.pop %v3400
    %v3402 = vmul.f32 %v3382, 1.442695
    %v3403 = vpow.pop %v3402
    %v3404 = vmul.f32 %v3383, 1.442695
    %v3405 = vpow.pop %v3404
    %v3406 = vmul.f32 %v3384, 1.442695
    %v3407 = vpow.pop %v3406
    %v3408 = vmul.f32 %v3385, 1.442695
    %v3409 = vpow.pop %v3408
    %v3410 = vmul.f32 %v3386, 1.442695
    %v3411 = vpow.pop %v3410
    %v3412 = vmul.f32 %v3387, 1.442695
    %v3413 = vpow.pop %v3412
    %v3414 = vmul.f32 %v3388, 1.442695
    %v3415 = vpow.pop %v3414
    %v3416 = vmul.f32 %v3389, 1.442695
    %v3417 = vpow.pop %v3416
    %v3418 = vadd.f32 %v3391, 1.0
    %v3419 = vadd.f32 %v3393, 1.0
    %v3420 = vadd.f32 %v3395, 1.0
    %v3421 = vadd.f32 %v3397, 1.0
    %v3422 = vadd.f32 %v3399, 1.0
    %v3423 = vadd.f32 %v3401, 1.0
    %v3424 = vadd.f32 %v3403, 1.0
    %v3425 = vadd.f32 %v3405, 1.0
    %v3426 = vadd.f32 %v3407, 1.0
    %v3427 = vadd.f32 %v3409, 1.0
    %v3428 = vadd.f32 %v3411, 1.0
    %v3429 = vadd.f32 %v3413, 1.0
    %v3430 = vadd.f32 %v3415, 1.0
    %v3431 = vadd.f32 %v3417, 1.0
    %v3432 = vrcp.pop %v3418
    %v3433 = vrcp.pop %v3419
    %v3434 = vrcp.pop %v3420
    %v3435 = vrcp.pop %v3421
    %v3436 = vrcp.pop %v3422
    %v3437 = vrcp.pop %v3423
    %v3438 = vrcp.pop %v3424
    %v3439 = vrcp.pop %v3425
    %v3440 = vrcp.pop %v3426
    %v3441 = vrcp.pop %v3427
    %v3442 = vrcp.pop %v3428
    %v3443 = vrcp.pop %v3429
    %v3444 = vrcp.pop %v3430
    %v3445 = vrcp.pop %v3431
    %v3446 = vpack.c.bf16 %v3439, %v3432
    %v3447 = vpack.c.bf16 %v3440, %v3433
    %v3448 = vpack.c.bf16 %v3441, %v3434
    %v3449 = vpack.c.bf16 %v3442, %v3435
    %v3450 = vpack.c.bf16 %v3443, %v3436
    %v3451 = vpack.c.bf16 %v3444, %v3437
    %v3452 = vpack.c.bf16 %v3445, %v3438
    %v3460 = vunpack.c.l.b16 %v3446
    %v3461 = vunpack.c.l.b16 %v3447
    %v3462 = vunpack.c.l.b16 %v3448
    %v3463 = vunpack.c.l.b16 %v3449
    %v3464 = vunpack.c.l.b16 %v3450
    %v3465 = vunpack.c.l.b16 %v3451
    %v3466 = vunpack.c.l.b16 %v3452
    %v3467 = vunpack.c.h.b16 %v3446
    %v3468 = vunpack.c.h.b16 %v3447
    %v3469 = vunpack.c.h.b16 %v3448
    %v3470 = vunpack.c.h.b16 %v3449
    %v3471 = vunpack.c.h.b16 %v3450
    %v3472 = vunpack.c.h.b16 %v3451
    %v3473 = vunpack.c.h.b16 %v3452
    %v3474 = vpack.c.b16 %v3461, %v3460
    %v3475 = vpack.c.b16 %v3463, %v3462
    %v3476 = vpack.c.b16 %v3465, %v3464
    %v3477 = vpack.c.b16 %v3466, %v3466
    %v3478 = vpack.c.b16 %v3468, %v3467
    %v3479 = vpack.c.b16 %v3470, %v3469
    %v3480 = vpack.c.b16 %v3472, %v3471
    %v3481 = vpack.c.b16 %v3473, %v3473
    %3490 = vst [vmem:[#allocation8] sm:$0xff] %v3474
    %3491 = vst [vmem:[#allocation8 + $0x8] sm:$0xff] %v3475
    %3492 = vst [vmem:[#allocation8 + $0x10] sm:$0xff] %v3476
    %3493 = vst [vmem:[#allocation8 + $0x18] sm:$0xf] %v3477
    %3494 = vst [vmem:[#allocation8 + $0x1c] sm:$0xff] %v3478
    %3495 = vst [vmem:[#allocation8 + $0x24] sm:$0xff] %v3479
    %3496 = vst [vmem:[#allocation8 + $0x2c] sm:$0xff] %v3480
    %3497 = vst [vmem:[#allocation8 + $0x34] sm:$0xf] %v3481
    // Predicated region
    $region42: #{decoder_forward.1} parent=1 // pred_check
      _
    $region43: #{decoder_forward.1} parent=1 // pred_check_branch
      %3499 = sbr.rel (0) target = $region45
    $region44: #{decoder_forward.1} parent=1 // pred_region
      %s3501 = ssub.s32 896, 896
      %3502 = vsyncadd [#allocation4], %s3501
      %s3503 = sshll.u32 [#allocation8], 4
      %s3504 = int_to_ptr.vmem [resolvable:$true] %s3503
      %3509 = dma.vmem_to_hbm [thread:$0]  %s3504, 896, %s7, [#allocation4], 448, 448, 28
    $region45: #{decoder_forward.1} parent=1 // pred_fallthru
      _
    // Predicated region
    $region46: #{decoder_forward.1} parent=1 // pred_check
      _
    $region47: #{decoder_forward.1} parent=1 // pred_check_branch
      %3511 = sbr.rel (0) target = $region49
    $region48: #{decoder_forward.1} parent=1 // pred_region
      %3512 = dma.done [#allocation4], 896
    $region49: #{decoder_forward.1} parent=1 // pred_fallthru
      _
    %3513 = vsyncpa [#allocation3], 1
    %3514 = vsyncpa [#allocation6], 1
    %3515 = vsyncpa [#allocation4], 1

</llo_original>
